<compile_context>
chip_gen: v7x
topology: tpu7x:2x2x1
jax: 0.10.0
libtpu: 0.0.40
codegen_flags: <defaults>
</compile_context>

<pallas_src>
import functools
import math

import jax
import jax.numpy as jnp
from jax.experimental import pallas as pl
from jax.experimental.pallas import tpu as pltpu


# ---------------- hardware / sizing helpers ----------------

_VMEM_CAP_CACHE = {}


def _vmem_capacity():
    """Per-TensorCore VMEM capacity in bytes (conservative 64 MiB fallback)."""
    if "cap" not in _VMEM_CAP_CACHE:
        cap = 0
        try:
            info = pltpu.get_tpu_info()
            cap = int(getattr(info, "vmem_capacity_bytes", 0) or 0)
        except Exception:
            cap = 0
        _VMEM_CAP_CACHE["cap"] = cap if cap > 0 else (64 << 20)
    return _VMEM_CAP_CACHE["cap"]


def _round_up(x, m):
    return ((x + m - 1) // m) * m


def _blk_bytes(shape, itemsize):
    """VMEM footprint of one block, including (8, 128) tile padding."""
    s = [int(d) for d in shape]
    s[-1] = _round_up(s[-1], 128)
    if len(s) >= 2:
        s[-2] = _round_up(s[-2], 8)
    n = 1
    for d in s:
        n *= d
    return n * itemsize


def _vmem_limit(est_bytes, cap):
    """Declared VMEM limit: generous vs. the estimate, with physical headroom."""
    limit = max(2 * est_bytes + (8 << 20), 32 << 20)
    return int(min(limit, int(cap * 0.85)))


def _pick_seq_tile(length, target):
    """Tile of a sequence-like axis: divides `length`, is a multiple of 8 (or the
    full axis), <= target, and leaves >= 2 grid steps when the shape allows it."""
    target = max(8, int(target))
    best = length
    t = min(target, (length // 8) * 8)
    while t >= 8:
        if length % t == 0:
            best = t
            break
        t -= 8
    if (best == length and length >= 16 and length % 2 == 0
            and (length // 2) % 8 == 0):
        best = length // 2          # prefer >= 2 grid steps
    return best


def _stage13_tile(length, batch, e_dim, a_dim, cap):
    """Length tile for the projection stages (per-block working set fits VMEM)."""
    gen_target = 512 if cap >= (100 << 20) else 256
    per_row = (2 * _blk_bytes((batch, e_dim), 4)          # x slice + V out rows
               + _blk_bytes((batch, a_dim), 4)            # att out rows
               + 2 * _blk_bytes((1, e_dim + a_dim), 4))   # in-kernel temporaries
    budget = cap // 8
    fit = max(8, budget // max(per_row, 1))
    return _pick_seq_tile(length, min(gen_target, fit))


def _dispatch_tile(bh, length, head_dim, levels, cap):
    """(B*H) tile for the dispatch stage (accounts for lane padding when hd<128)."""
    per_row = (4 * _blk_bytes((length, head_dim), 4)      # V in/out/rolled/product
               + 3 * _blk_bytes((length, levels), 4))     # att + mask + masked att
    budget = cap // 6
    tbh = max(1, min(bh, budget // max(per_row, 1)))
    if bh >= 2:
        tbh = min(tbh, max(1, bh // 2))                   # keep >= 2 grid steps
    while bh % tbh:
        tbh -= 1
    return tbh


# ---------------- kernels ----------------

def _make_proj_fold_kernel(batch, e_dim):
    """Stage 1, transpose folded: x block (tml, B, E) read straight from `value`,
    outputs written b-major as (B, tml, E) / (B, tml, A)."""
    def kernel(x_ref, w_ref, v_ref, a_ref):
        w = w_ref[...]
        for b in range(batch):                             # static unroll, B small
            xb = x_ref[:, b, :].astype(jnp.bfloat16)       # (tml, E)
            proj = jnp.dot(xb, w, preferred_element_type=jnp.float32)
            v_ref[b] = proj[:, :e_dim]
            a_ref[b] = proj[:, e_dim:]
    return kernel


def _make_out_fold_kernel(batch):
    """Stage 3, transpose folded: V block (B, tml, E) bf16 in, (tml, B, E) f32 out."""
    def kernel(v_ref, w_ref, o_ref):
        w = w_ref[...]
        for b in range(batch):
            y = jnp.dot(v_ref[b], w, preferred_element_type=jnp.float32)
            o_ref[:, b, :] = y
    return kernel


def _proj_flat_kernel(x_ref, w_ref, v_ref, a_ref):
    """Stage 1 fallback (pre-transposed bf16 rows): [V | att] = x @ [W_in | W_att]."""
    proj = jnp.dot(x_ref[...], w_ref[...], preferred_element_type=jnp.float32)
    e = v_ref.shape[-1]
    v_ref[...] = proj[:, :e]
    a_ref[...] = proj[:, e:]


def _out_flat_kernel(v_ref, w_ref, o_ref):
    """Stage 3 fallback: out = V_bf16 @ W_out."""
    o_ref[...] = jnp.dot(v_ref[...], w_ref[...], preferred_element_type=jnp.float32)


def _make_dispatch_kernel(active_shifts, use_xlu_roll):
    """Stage 2: sequential V += (att*mask)_i * roll(V, shift_i, axis=1); bf16 store."""
    if use_xlu_roll:
        def _roll(v, s):
            return pltpu.roll(v, s, axis=1)        # XLU sublane rotate
    else:
        def _roll(v, s):
            return jnp.roll(v, s, axis=1)          # concat-of-slices fallback

    def kernel(v_ref, a_ref, m_ref, o_ref):
        V = v_ref[...]                             # (tbh, L, hd) f32
        att = a_ref[...] * m_ref[...]              # masked attention, f32
        for i, shift in enumerate(active_shifts):
            # torch.roll(V, shift, dims=1): out[j] = V[(j - shift) mod L]
            V = V + att[:, :, i:i + 1] * _roll(V, shift)
        o_ref[...] = V.astype(o_ref.dtype)         # bf16 (matches reference cast)
    return kernel


# ---------------- capability probes (tiny cached pallas_calls) ----------------

_PROBE_CACHE = {}


def _probe(key, fn):
    if key not in _PROBE_CACHE:
        try:
            _PROBE_CACHE[key] = bool(fn())
        except Exception:
            _PROBE_CACHE[key] = False
    return _PROBE_CACHE[key]


def _xlu_roll_supported(tbh, length, head_dim):
    """pltpu.roll lowers AND matches jnp.roll at the actual dispatch block shape."""
    def run():
        def probe_kernel(x_ref, o_ref):
            o_ref[...] = pltpu.roll(x_ref[...], 1, axis=1)
        n = tbh * length * head_dim
        x = (jnp.arange(n, dtype=jnp.float32) % 257.0).reshape(tbh, length, head_dim)
        y = pl.pallas_call(
            probe_kernel, out_shape=jax.ShapeDtypeStruct(x.shape, x.dtype))(x)
        return jnp.allclose(y, jnp.roll(x, 1, axis=1))
    return _probe(("roll", int(tbh), int(length), int(head_dim)), run)


def _mid_dim_indexing_supported():
    """Integer indexing of a middle (second-minor) ref dim for loads AND stores
    (required by the transpose-folded projection kernels)."""
    def run():
        def probe_kernel(x_ref, o_ref):
            for b in range(x_ref.shape[1]):
                o_ref[:, b, :] = x_ref[:, b, :] * 2.0
        x = jnp.arange(16 * 2 * 128, dtype=jnp.float32).reshape(16, 2, 128)
        y = pl.pallas_call(
            probe_kernel, out_shape=jax.ShapeDtypeStruct(x.shape, x.dtype))(x)
        return jnp.allclose(y, x * 2.0)
    return _probe("mid_dim_indexing", run)


def _buffered_weight_supported():
    """pl.Buffered(1) single-buffering on a grid-invariant input."""
    def run():
        def probe_kernel(x_ref, w_ref, o_ref):
            o_ref[...] = jnp.dot(x_ref[...], w_ref[...],
                                 preferred_element_type=jnp.float32)
        x = jnp.full((16, 128), 0.5, jnp.float32)
        w = jnp.full((128, 128), 0.25, jnp.float32)
        y = pl.pallas_call(
            probe_kernel, grid=(2,),
            in_specs=[pl.BlockSpec((8, 128), lambda i: (i, 0)),
                      pl.BlockSpec((128, 128), lambda i: (0, 0),
                                   pipeline_mode=pl.Buffered(1))],
            out_specs=pl.BlockSpec((8, 128), lambda i: (i, 0)),
            out_shape=jax.ShapeDtypeStruct((16, 128), jnp.float32),
        )(x, w)
        return jnp.allclose(y, x @ w)
    return _probe("buffered_weight", run)


def _weight_spec(shape, single_buffer):
    """BlockSpec for a grid-invariant 2-D weight (optionally single-buffered)."""
    if single_buffer:
        return pl.BlockSpec(shape, lambda i: (0, 0), pipeline_mode=pl.Buffered(1))
    return pl.BlockSpec(shape, lambda i: (0, 0))


# ---------------- forward ----------------

@functools.partial(
    jax.jit,
    static_argnames=("num_heads", "shifts", "use_xlu_roll", "fold_transposes",
                     "single_buffer_weights"))
def _dispatcher_forward(value, attn_mask, w_cat_bf16, w_out_bf16, *,
                        num_heads, shifts, use_xlu_roll, fold_transposes,
                        single_buffer_weights):
    L, B, E = value.shape
    H = num_heads
    hd = E // H
    levels = len(shifts)
    A = levels * H
    BH = B * H
    N = B * L
    cap = _vmem_capacity()
    wbuf = 1 if single_buffer_weights else 2
    sem = ("parallel",)
    gen_target = 512 if cap >= (100 << 20) else 256

    # ---- stage 1: fused input/attention projection ----
    if fold_transposes:
        tml = _stage13_tile(L, B, E, A, cap)
        est1 = (2 * _blk_bytes((tml, B, E), 4)
                + wbuf * _blk_bytes((E, E + A), 2)
                + 2 * _blk_bytes((B, tml, E), 4)
                + 2 * _blk_bytes((B, tml, A), 4)
                + 2 * _blk_bytes((tml, E + A), 4))
        v_bl, att_bl = pl.pallas_call(
            _make_proj_fold_kernel(B, E),
            grid=(L // tml,),
            in_specs=[
                pl.BlockSpec((tml, B, E), lambda j: (j, 0, 0)),   # straight from value
                _weight_spec((E, E + A), single_buffer_weights),
            ],
            out_specs=(
                pl.BlockSpec((B, tml, E), lambda j: (0, j, 0)),   # b-major write
                pl.BlockSpec((B, tml, A), lambda j: (0, j, 0)),
            ),
            out_shape=(jax.ShapeDtypeStruct((B, L, E), jnp.float32),
                       jax.ShapeDtypeStruct((B, L, A), jnp.float32)),
            compiler_params=pltpu.CompilerParams(
                dimension_semantics=sem, vmem_limit_bytes=_vmem_limit(est1, cap)),
        )(value, w_cat_bf16)
        v_flat = v_bl.reshape(N, E)
        a_flat = att_bl.reshape(N, A)
    else:
        # Fallback: materialize the transpose once, fused with the bf16 cast.
        x2d = jnp.transpose(value, (1, 0, 2)).reshape(N, E).astype(jnp.bfloat16)
        tm = _pick_seq_tile(N, gen_target)
        est1 = (2 * _blk_bytes((tm, E), 2)
                + wbuf * _blk_bytes((E, E + A), 2)
                + 2 * _blk_bytes((tm, E), 4) + 2 * _blk_bytes((tm, A), 4)
                + 2 * _blk_bytes((tm, E + A), 4))
        v_flat, a_flat = pl.pallas_call(
            _proj_flat_kernel,
            grid=(N // tm,),
            in_specs=[pl.BlockSpec((tm, E), lambda i: (i, 0)),
                      _weight_spec((E, E + A), single_buffer_weights)],
            out_specs=(pl.BlockSpec((tm, E), lambda i: (i, 0)),
                       pl.BlockSpec((tm, A), lambda i: (i, 0))),
            out_shape=(jax.ShapeDtypeStruct((N, E), jnp.float32),
                       jax.ShapeDtypeStruct((N, A), jnp.float32)),
            compiler_params=pltpu.CompilerParams(
                dimension_semantics=sem, vmem_limit_bytes=_vmem_limit(est1, cap)),
        )(x2d, w_cat_bf16)

    # raw row-major reshapes -- identical semantics to torch .reshape (free bitcasts)
    V3 = v_flat.reshape(BH, L, hd)
    att3 = a_flat.reshape(BH, L, levels)
    mask3 = jnp.broadcast_to(attn_mask, (BH, L, levels)).astype(jnp.float32)

    # ---- stage 2: sequential roll-and-accumulate dispatch (mask applied here) ----
    active_shifts = tuple(s for s in shifts if s <= L)
    tbh = _dispatch_tile(BH, L, hd, levels, cap)
    est2 = (5 * _blk_bytes((tbh, L, hd), 4)
            + 5 * _blk_bytes((tbh, L, levels), 4)
            + 2 * _blk_bytes((tbh, L, hd), 2))
    V3b = pl.pallas_call(
        _make_dispatch_kernel(active_shifts, use_xlu_roll),
        grid=(BH // tbh,),
        in_specs=[pl.BlockSpec((tbh, L, hd), lambda i: (i, 0, 0)),
                  pl.BlockSpec((tbh, L, levels), lambda i: (i, 0, 0)),
                  pl.BlockSpec((tbh, L, levels), lambda i: (i, 0, 0))],
        out_specs=pl.BlockSpec((tbh, L, hd), lambda i: (i, 0, 0)),
        out_shape=jax.ShapeDtypeStruct((BH, L, hd), jnp.bfloat16),
        compiler_params=pltpu.CompilerParams(
            dimension_semantics=sem, vmem_limit_bytes=_vmem_limit(est2, cap)),
    )(V3, att3, mask3)

    # ---- stage 3: output projection (bf16 in, f32 out) ----
    if fold_transposes:
        Vb = V3b.reshape(B, L, E)
        tml = _stage13_tile(L, B, E, A, cap)
        est3 = (2 * _blk_bytes((B, tml, E), 2)
                + wbuf * _blk_bytes((E, E), 2)
                + 2 * _blk_bytes((tml, B, E), 4)
                + 2 * _blk_bytes((tml, E), 4))
        out = pl.pallas_call(
            _make_out_fold_kernel(B),
            grid=(L // tml,),
            in_specs=[pl.BlockSpec((B, tml, E), lambda j: (0, j, 0)),
                      _weight_spec((E, E), single_buffer_weights)],
            out_specs=pl.BlockSpec((tml, B, E), lambda j: (j, 0, 0)),  # (L,B,E) direct
            out_shape=jax.ShapeDtypeStruct((L, B, E), jnp.float32),
            compiler_params=pltpu.CompilerParams(
                dimension_semantics=sem, vmem_limit_bytes=_vmem_limit(est3, cap)),
        )(Vb, w_out_bf16)
        return out

    v2d = V3b.reshape(N, E)
    tm = _pick_seq_tile(N, gen_target)
    est3 = (2 * _blk_bytes((tm, E), 2) + wbuf * _blk_bytes((E, E), 2)
            + 4 * _blk_bytes((tm, E), 4))
    out2d = pl.pallas_call(
        _out_flat_kernel,
        grid=(N // tm,),
        in_specs=[pl.BlockSpec((tm, E), lambda i: (i, 0)),
                  _weight_spec((E, E), single_buffer_weights)],
        out_specs=pl.BlockSpec((tm, E), lambda i: (i, 0)),
        out_shape=jax.ShapeDtypeStruct((N, E), jnp.float32),
        compiler_params=pltpu.CompilerParams(
            dimension_semantics=sem, vmem_limit_bytes=_vmem_limit(est3, cap)),
    )(v2d, w_out_bf16)
    return jnp.transpose(out2d.reshape(B, L, E), (1, 0, 2))


# ---------------- module wrapper ----------------

class DispatcherLayerPallas:
    def __init__(self, embed_dim, num_heads, bptt, key, dropout=0.0):
        self._levels = int(math.log(bptt, 2))
        self._shifts = tuple(2 ** i for i in range(self._levels))
        self.embed_dim = embed_dim
        self.num_heads = num_heads
        self.head_dim = embed_dim // num_heads
        self.dropout = dropout
        k1, k2, k3 = jax.random.split(key, 3)
        scale = 1.0 / math.sqrt(embed_dim)
        # Deterministic synthetic weights, stored pre-transposed (in, out) so the
        # kernels compute x @ W (== x @ torch_weight.T).
        self.w_in = jax.random.normal(k1, (embed_dim, embed_dim), jnp.float32) * scale
        self.w_att = jax.random.normal(
            k2, (embed_dim, self._levels * num_heads), jnp.float32) * scale
        self.w_out = jax.random.normal(k3, (embed_dim, embed_dim), jnp.float32) * scale
        # bf16 copies feed the MXU (f32 accumulation); f32 masters for the ref check.
        self.w_cat_bf16 = jnp.concatenate(
            [self.w_in, self.w_att], axis=1).astype(jnp.bfloat16)
        self.w_out_bf16 = self.w_out.astype(jnp.bfloat16)

    def __call__(self, value, attn_mask):
        L, B, _ = value.shape
        cap = _vmem_capacity()
        tbh = _dispatch_tile(B * self.num_heads, L, self.head_dim,
                             self._levels, cap)
        use_xlu_roll = _xlu_roll_supported(tbh, L, self.head_dim)
        fold_transposes = _mid_dim_indexing_supported()
        # Single-buffered weights only matter when the weight is large; size-gate
        # the (probed) feature so small configs never depend on it.
        w_bytes = self.embed_dim * (self.embed_dim
                                    + self._levels * self.num_heads) * 2
        single_buffer_weights = (w_bytes > (4 << 20)
                                 and _buffered_weight_supported())
        return _dispatcher_forward(
            value, attn_mask, self.w_cat_bf16, self.w_out_bf16,
            num_heads=self.num_heads, shifts=self._shifts,
            use_xlu_roll=use_xlu_roll, fold_transposes=fold_transposes,
            single_buffer_weights=single_buffer_weights)


# ---------------- pure-JAX reference (mirrors the bf16-MXU casts) ----------------

def reference_forward(value, attn_mask, w_in, w_att, w_out, num_heads, shifts):
    L, B, E = value.shape
    H = num_heads
    hd = E // H
    levels = len(shifts)

    def mm(x, w):
        return jnp.dot(x.astype(jnp.bfloat16), w.astype(jnp.bfloat16),
                       preferred_element_type=jnp.float32)

    inp = jnp.transpose(value, (1, 0, 2)).reshape(B * L, E)
    V = mm(inp, w_in)
    att = mm(inp, w_att).reshape(B * H, L, levels)
    att = att * jnp.broadcast_to(attn_mask, att.shape).astype(jnp.float32)
    V = V.reshape(B * H, L, hd)
    for i, shift in enumerate(shifts):
        if shift > L:
            break
        V = V + att[:, :, i:i + 1] * jnp.roll(V, shift, axis=1)
    out = mm(V.reshape(B * L, E), w_out).reshape(B, L, E)
    return jnp.transpose(out, (1, 0, 2))


if __name__ == "__main__":
    embed_dim, num_heads, bptt = 32, 4, 8
    batch, length = 2, 8     # length == bptt; levels = 3, shifts = (1, 2, 4)

    key = jax.random.PRNGKey(0)
    k_param, k_val, k_mask = jax.random.split(key, 3)

    layer = DispatcherLayerPallas(embed_dim, num_heads, bptt, k_param)

    value = jax.random.normal(k_val, (length, batch, embed_dim), jnp.float32)
    # mask broadcast-compatible with attention of shape (B*H, L, levels)
    attn_mask = (jax.random.uniform(
        k_mask, (batch * num_heads, length, layer._levels)) > 0.3
    ).astype(jnp.float32)

    out = layer(value, attn_mask)
    out = jax.block_until_ready(out)

    ref = reference_forward(value, attn_mask, layer.w_in, layer.w_att,
                            layer.w_out, num_heads, layer._shifts)

    assert out.shape == (length, batch, embed_dim), out.shape
    max_err = float(jnp.max(jnp.abs(out - ref)))
    assert jnp.allclose(out, ref, atol=2e-2, rtol=2e-2), max_err

    print("KERNEL_OK")
</pallas_src>

<mosaic_0001>
module attributes {stable_mosaic.version = 11 : i64} {
  func.func @probe_kernel(%arg0: memref<4x8x8xf32, #tpu.memory_space<vmem>>, %arg1: memref<4x8x8xf32, #tpu.memory_space<vmem>>) attributes {dimension_semantics = [], scalar_prefetch = 0 : i64, scratch_operands = 0 : i64, tpu.core_type = #tpu.core_type<tc>} {
    %c0 = arith.constant 0 : index
    %c0_0 = arith.constant 0 : index
    %c0_1 = arith.constant 0 : index
    %0 = vector.load %arg0[%c0, %c0_0, %c0_1] : memref<4x8x8xf32, #tpu.memory_space<vmem>>, vector<4x8x8xf32>
    %c1_i32 = arith.constant 1 : i32
    %1 = tpu.dynamic_rotate %0 by %c1_i32 dim 1 : vector<4x8x8xf32>, i32 -> vector<4x8x8xf32>
    %c0_2 = arith.constant 0 : index
    %c0_3 = arith.constant 0 : index
    %c0_4 = arith.constant 0 : index
    %2 = vector.load %arg1[%c0_2, %c0_3, %c0_4] : memref<4x8x8xf32, #tpu.memory_space<vmem>>, vector<4x8x8xf32>
    tpu.vector_store %arg1[%c0_2, %c0_3, %c0_4], %1 {strides = array<i32>} : memref<4x8x8xf32, #tpu.memory_space<vmem>>, vector<4x8x8xf32>,
    return
  }
}

module attributes {stable_mosaic.version = 11 : i64} {
  func.func @probe_kernel(%arg0: memref<16x2x128xf32, #tpu.memory_space<vmem>>, %arg1: memref<16x2x128xf32, #tpu.memory_space<vmem>>) attributes {dimension_semantics = [], scalar_prefetch = 0 : i64, scratch_operands = 0 : i64, tpu.core_type = #tpu.core_type<tc>} {
    %c0 = arith.constant 0 : index
    %c0_0 = arith.constant 0 : index
    %c0_1 = arith.constant 0 : index
    %0 = vector.load %arg0[%c0, %c0_0, %c0_1] : memref<16x2x128xf32, #tpu.memory_space<vmem>>, vector<16x1x128xf32>
    %1 = vector.shape_cast %0 : vector<16x1x128xf32> to vector<16x128xf32>
    %cst = arith.constant 2.000000e+00 : f32
    %2 = vector.broadcast %cst : f32 to vector<16x128xf32>
    %3 = arith.mulf %1, %2 : vector<16x128xf32>
    %c0_2 = arith.constant 0 : index
    %c0_3 = arith.constant 0 : index
    %c0_4 = arith.constant 0 : index
    %4 = vector.load %arg1[%c0_2, %c0_3, %c0_4] : memref<16x2x128xf32, #tpu.memory_space<vmem>>, vector<16x1x128xf32>
    %5 = vector.shape_cast %4 : vector<16x1x128xf32> to vector<16x128xf32>
    %6 = vector.shape_cast %3 : vector<16x128xf32> to vector<16x1x128xf32>
    tpu.vector_store %arg1[%c0_2, %c0_3, %c0_4], %6 {strides = array<i32>} : memref<16x2x128xf32, #tpu.memory_space<vmem>>, vector<16x1x128xf32>,
    %c0_5 = arith.constant 0 : index
    %c1 = arith.constant 1 : index
    %c0_6 = arith.constant 0 : index
    %7 = vector.load %arg0[%c0_5, %c1, %c0_6] : memref<16x2x128xf32, #tpu.memory_space<vmem>>, vector<16x1x128xf32>
    %8 = vector.shape_cast %7 : vector<16x1x128xf32> to vector<16x128xf32>
    %cst_7 = arith.constant 2.000000e+00 : f32
    %9 = vector.broadcast %cst_7 : f32 to vector<16x128xf32>
    %10 = arith.mulf %8, %9 : vector<16x128xf32>
    %c0_8 = arith.constant 0 : index
    %c1_9 = arith.constant 1 : index
    %c0_10 = arith.constant 0 : index
    %11 = vector.load %arg1[%c0_8, %c1_9, %c0_10] : memref<16x2x128xf32, #tpu.memory_space<vmem>>, vector<16x1x128xf32>
    %12 = vector.shape_cast %11 : vector<16x1x128xf32> to vector<16x128xf32>
    %13 = vector.shape_cast %10 : vector<16x128xf32> to vector<16x1x128xf32>
    tpu.vector_store %arg1[%c0_8, %c1_9, %c0_10], %13 {strides = array<i32>} : memref<16x2x128xf32, #tpu.memory_space<vmem>>, vector<16x1x128xf32>,
    return
  }
}

module attributes {stable_mosaic.version = 11 : i64} {
  func.func @_proj_flat_kernel(%arg0: i32, %arg1: memref<8x32xbf16, #tpu.memory_space<vmem>>, %arg2: memref<32x44xbf16, #tpu.memory_space<vmem>>, %arg3: memref<8x32xf32, #tpu.memory_space<vmem>>, %arg4: memref<8x12xf32, #tpu.memory_space<vmem>>) attributes {dimension_semantics = [#tpu.dimension_semantics<parallel>], iteration_bounds = array<i64: 2>, scalar_prefetch = 0 : i64, scratch_operands = 0 : i64, tpu.core_type = #tpu.core_type<tc>, window_params = [{transform_indices = @transform_0, window_bounds = array<i64: 8, 32>}, {pipeline_mode = #tpu.pipeline_mode<synchronous>, transform_indices = @transform_1, window_bounds = array<i64: 32, 44>}, {transform_indices = @transform_2, window_bounds = array<i64: 8, 32>}, {transform_indices = @transform_3, window_bounds = array<i64: 8, 12>}]} {
    %c0 = arith.constant 0 : index
    %c0_0 = arith.constant 0 : index
    %0 = vector.load %arg1[%c0, %c0_0] : memref<8x32xbf16, #tpu.memory_space<vmem>>, vector<8x32xbf16>
    %c0_1 = arith.constant 0 : index
    %c0_2 = arith.constant 0 : index
    %1 = vector.load %arg2[%c0_1, %c0_2] : memref<32x44xbf16, #tpu.memory_space<vmem>>, vector<32x44xbf16>
    %cst = arith.constant dense<0.000000e+00> : vector<8x44xf32>
    %2 = tpu.matmul %0, %1, %cst {dimension_numbers = #tpu.dot_dimension_numbers<[1], [0], [0], [1], [0, 0, 1, 1], [], []>} : vector<8x32xbf16>, vector<32x44xbf16>, vector<8x44xf32> -> vector<8x44xf32>
    %3 = vector.extract_strided_slice %2 {offsets = [0, 0], sizes = [8, 32], strides = [1, 1]} : vector<8x44xf32> to vector<8x32xf32>
    %c0_3 = arith.constant 0 : index
    %c0_4 = arith.constant 0 : index
    %4 = vector.load %arg3[%c0_3, %c0_4] : memref<8x32xf32, #tpu.memory_space<vmem>>, vector<8x32xf32>
    tpu.vector_store %arg3[%c0_3, %c0_4], %3 {strides = array<i32>} : memref<8x32xf32, #tpu.memory_space<vmem>>, vector<8x32xf32>,
    %5 = vector.extract_strided_slice %2 {offsets = [0, 32], sizes = [8, 12], strides = [1, 1]} : vector<8x44xf32> to vector<8x12xf32>
    %c0_5 = arith.constant 0 : index
    %c0_6 = arith.constant 0 : index
    %6 = vector.load %arg4[%c0_5, %c0_6] : memref<8x12xf32, #tpu.memory_space<vmem>>, vector<8x12xf32>
    tpu.vector_store %arg4[%c0_5, %c0_6], %5 {strides = array<i32>} : memref<8x12xf32, #tpu.memory_space<vmem>>, vector<8x12xf32>,
    return
  }
  func.func @transform_0(%arg0: i32) -> (i32, i32) {
    %c0_i32 = arith.constant 0 : i32
    %c0_i32_0 = arith.constant 0 : i32
    return %arg0, %c0_i32 : i32, i32
  }
  func.func @transform_1(%arg0: i32) -> (i32, i32) {
    %c0_i32 = arith.constant 0 : i32
    %c0_i32_0 = arith.constant 0 : i32
    %c0_i32_1 = arith.constant 0 : i32
    return %c0_i32, %c0_i32_0 : i32, i32
  }
  func.func @transform_2(%arg0: i32) -> (i32, i32) {
    %c0_i32 = arith.constant 0 : i32
    %c0_i32_0 = arith.constant 0 : i32
    return %arg0, %c0_i32 : i32, i32
  }
  func.func @transform_3(%arg0: i32) -> (i32, i32) {
    %c0_i32 = arith.constant 0 : i32
    %c0_i32_0 = arith.constant 0 : i32
    return %arg0, %c0_i32 : i32, i32
  }
}

module attributes {stable_mosaic.version = 11 : i64} {
  func.func @kernel(%arg0: i32, %arg1: memref<4x8x8xf32, #tpu.memory_space<vmem>>, %arg2: memref<4x8x3xf32, #tpu.memory_space<vmem>>, %arg3: memref<4x8x3xf32, #tpu.memory_space<vmem>>, %arg4: memref<4x8x8xbf16, #tpu.memory_space<vmem>>) attributes {dimension_semantics = [#tpu.dimension_semantics<parallel>], iteration_bounds = array<i64: 2>, scalar_prefetch = 0 : i64, scratch_operands = 0 : i64, tpu.core_type = #tpu.core_type<tc>, window_params = [{transform_indices = @transform_0, window_bounds = array<i64: 4, 8, 8>}, {transform_indices = @transform_1, window_bounds = array<i64: 4, 8, 3>}, {transform_indices = @transform_2, window_bounds = array<i64: 4, 8, 3>}, {transform_indices = @transform_3, window_bounds = array<i64: 4, 8, 8>}]} {
    %c0 = arith.constant 0 : index
    %c0_0 = arith.constant 0 : index
    %c0_1 = arith.constant 0 : index
    %0 = vector.load %arg1[%c0, %c0_0, %c0_1] : memref<4x8x8xf32, #tpu.memory_space<vmem>>, vector<4x8x8xf32>
    %c0_2 = arith.constant 0 : index
    %c0_3 = arith.constant 0 : index
    %c0_4 = arith.constant 0 : index
    %1 = vector.load %arg2[%c0_2, %c0_3, %c0_4] : memref<4x8x3xf32, #tpu.memory_space<vmem>>, vector<4x8x3xf32>
    %c0_5 = arith.constant 0 : index
    %c0_6 = arith.constant 0 : index
    %c0_7 = arith.constant 0 : index
    %2 = vector.load %arg3[%c0_5, %c0_6, %c0_7] : memref<4x8x3xf32, #tpu.memory_space<vmem>>, vector<4x8x3xf32>
    %3 = arith.mulf %1, %2 : vector<4x8x3xf32>
    %4 = vector.extract_strided_slice %3 {offsets = [0, 0, 0], sizes = [4, 8, 1], strides = [1, 1, 1]} : vector<4x8x3xf32> to vector<4x8x1xf32>
    %5 = vector.extract_strided_slice %0 {offsets = [0, 7, 0], sizes = [4, 1, 8], strides = [1, 1, 1]} : vector<4x8x8xf32> to vector<4x1x8xf32>
    %6 = vector.extract_strided_slice %0 {offsets = [0, 0, 0], sizes = [4, 7, 8], strides = [1, 1, 1]} : vector<4x8x8xf32> to vector<4x7x8xf32>
    %7 = tpu.concatenate %5, %6 in 1 : vector<4x1x8xf32>, vector<4x7x8xf32> -> vector<4x8x8xf32>
    %8 = vector.broadcast %4 : vector<4x8x1xf32> to vector<4x8x8xf32>
    %9 = arith.mulf %8, %7 : vector<4x8x8xf32>
    %10 = arith.addf %0, %9 : vector<4x8x8xf32>
    %11 = vector.extract_strided_slice %3 {offsets = [0, 0, 1], sizes = [4, 8, 1], strides = [1, 1, 1]} : vector<4x8x3xf32> to vector<4x8x1xf32>
    %12 = vector.extract_strided_slice %10 {offsets = [0, 6, 0], sizes = [4, 2, 8], strides = [1, 1, 1]} : vector<4x8x8xf32> to vector<4x2x8xf32>
    %13 = vector.extract_strided_slice %10 {offsets = [0, 0, 0], sizes = [4, 6, 8], strides = [1, 1, 1]} : vector<4x8x8xf32> to vector<4x6x8xf32>
    %14 = tpu.concatenate %12, %13 in 1 : vector<4x2x8xf32>, vector<4x6x8xf32> -> vector<4x8x8xf32>
    %15 = vector.broadcast %11 : vector<4x8x1xf32> to vector<4x8x8xf32>
    %16 = arith.mulf %15, %14 : vector<4x8x8xf32>
    %17 = arith.addf %10, %16 : vector<4x8x8xf32>
    %18 = vector.extract_strided_slice %3 {offsets = [0, 0, 2], sizes = [4, 8, 1], strides = [1, 1, 1]} : vector<4x8x3xf32> to vector<4x8x1xf32>
    %19 = vector.extract_strided_slice %17 {offsets = [0, 4, 0], sizes = [4, 4, 8], strides = [1, 1, 1]} : vector<4x8x8xf32> to vector<4x4x8xf32>
    %20 = vector.extract_strided_slice %17 {offsets = [0, 0, 0], sizes = [4, 4, 8], strides = [1, 1, 1]} : vector<4x8x8xf32> to vector<4x4x8xf32>
    %21 = tpu.concatenate %19, %20 in 1 : vector<4x4x8xf32>, vector<4x4x8xf32> -> vector<4x8x8xf32>
    %22 = vector.broadcast %18 : vector<4x8x1xf32> to vector<4x8x8xf32>
    %23 = arith.mulf %22, %21 : vector<4x8x8xf32>
    %24 = arith.addf %17, %23 : vector<4x8x8xf32>
    %25 = arith.truncf %24 : vector<4x8x8xf32> to vector<4x8x8xbf16>
    %c0_8 = arith.constant 0 : index
    %c0_9 = arith.constant 0 : index
    %c0_10 = arith.constant 0 : index
    %26 = vector.load %arg4[%c0_8, %c0_9, %c0_10] : memref<4x8x8xbf16, #tpu.memory_space<vmem>>, vector<4x8x8xbf16>
    tpu.vector_store %arg4[%c0_8, %c0_9, %c0_10], %25 {strides = array<i32>} : memref<4x8x8xbf16, #tpu.memory_space<vmem>>, vector<4x8x8xbf16>,
    return
  }
  func.func @transform_0(%arg0: i32) -> (i32, i32, i32) {
    %c0_i32 = arith.constant 0 : i32
    %c0_i32_0 = arith.constant 0 : i32
    %c0_i32_1 = arith.constant 0 : i32
    return %arg0, %c0_i32, %c0_i32_0 : i32, i32, i32
  }
  func.func @transform_1(%arg0: i32) -> (i32, i32, i32) {
    %c0_i32 = arith.constant 0 : i32
    %c0_i32_0 = arith.constant 0 : i32
    %c0_i32_1 = arith.constant 0 : i32
    return %arg0, %c0_i32, %c0_i32_0 : i32, i32, i32
  }
  func.func @transform_2(%arg0: i32) -> (i32, i32, i32) {
    %c0_i32 = arith.constant 0 : i32
    %c0_i32_0 = arith.constant 0 : i32
    %c0_i32_1 = arith.constant 0 : i32
    return %arg0, %c0_i32, %c0_i32_0 : i32, i32, i32
  }
  func.func @transform_3(%arg0: i32) -> (i32, i32, i32) {
    %c0_i32 = arith.constant 0 : i32
    %c0_i32_0 = arith.constant 0 : i32
    %c0_i32_1 = arith.constant 0 : i32
    return %arg0, %c0_i32, %c0_i32_0 : i32, i32, i32
  }
}

module attributes {stable_mosaic.version = 11 : i64} {
  func.func @_out_flat_kernel(%arg0: i32, %arg1: memref<8x32xbf16, #tpu.memory_space<vmem>>, %arg2: memref<32x32xbf16, #tpu.memory_space<vmem>>, %arg3: memref<8x32xf32, #tpu.memory_space<vmem>>) attributes {dimension_semantics = [#tpu.dimension_semantics<parallel>], iteration_bounds = array<i64: 2>, scalar_prefetch = 0 : i64, scratch_operands = 0 : i64, tpu.core_type = #tpu.core_type<tc>, window_params = [{transform_indices = @transform_0, window_bounds = array<i64: 8, 32>}, {pipeline_mode = #tpu.pipeline_mode<synchronous>, transform_indices = @transform_1, window_bounds = array<i64: 32, 32>}, {transform_indices = @transform_2, window_bounds = array<i64: 8, 32>}]} {
    %c0 = arith.constant 0 : index
    %c0_0 = arith.constant 0 : index
    %0 = vector.load %arg1[%c0, %c0_0] : memref<8x32xbf16, #tpu.memory_space<vmem>>, vector<8x32xbf16>
    %c0_1 = arith.constant 0 : index
    %c0_2 = arith.constant 0 : index
    %1 = vector.load %arg2[%c0_1, %c0_2] : memref<32x32xbf16, #tpu.memory_space<vmem>>, vector<32x32xbf16>
    %cst = arith.constant dense<0.000000e+00> : vector<8x32xf32>
    %2 = tpu.matmul %0, %1, %cst {dimension_numbers = #tpu.dot_dimension_numbers<[1], [0], [0], [1], [0, 0, 1, 1], [], []>} : vector<8x32xbf16>, vector<32x32xbf16>, vector<8x32xf32> -> vector<8x32xf32>
    %c0_3 = arith.constant 0 : index
    %c0_4 = arith.constant 0 : index
    %3 = vector.load %arg3[%c0_3, %c0_4] : memref<8x32xf32, #tpu.memory_space<vmem>>, vector<8x32xf32>
    tpu.vector_store %arg3[%c0_3, %c0_4], %2 {strides = array<i32>} : memref<8x32xf32, #tpu.memory_space<vmem>>, vector<8x32xf32>,
    return
  }
  func.func @transform_0(%arg0: i32) -> (i32, i32) {
    %c0_i32 = arith.constant 0 : i32
    %c0_i32_0 = arith.constant 0 : i32
    return %arg0, %c0_i32 : i32, i32
  }
  func.func @transform_1(%arg0: i32) -> (i32, i32) {
    %c0_i32 = arith.constant 0 : i32
    %c0_i32_0 = arith.constant 0 : i32
    %c0_i32_1 = arith.constant 0 : i32
    return %c0_i32, %c0_i32_0 : i32, i32
  }
  func.func @transform_2(%arg0: i32) -> (i32, i32) {
    %c0_i32 = arith.constant 0 : i32
    %c0_i32_0 = arith.constant 0 : i32
    return %arg0, %c0_i32 : i32, i32
  }
}

</mosaic_0001>

<llo_original>
// kernel: tpu_custom_call.1
$region0: #{tpu_custom_call.1}
  #allocation0 [shape = 'u32[]', space=smem, size = 0x4, offset = 0x4, fixed_abs, tag = 'smem constant byte address 0x4 - core index']
  #allocation1 [shape = 'u32[144,128]{1,0:T(1,128)}', space=vmem, size = 0x12000, scoped, tag = 'internal scratch']
  %s0 = inlined_call_operand.hbm [shape: f32[4,8,8], index: 0, kind: input, shape index: {}]
  %s1 = inlined_call_operand.hbm [shape: f32[4,8,8], index: 1, kind: output, shape index: {}]
  %s2 = sld [smem:[#allocation0]]
  $region18: #{tpu_custom_call.1} parent=0
    _
  %s4 = ssub.s32 1, %s2
  %s5 = scalar_select 0, %s4, %s2
  $region1: #{tpu_custom_call.1} parent=0
    #allocation2 [shape = 'u8[16384]{0}', space=vmem, size = 0x4000, scoped, tag = 'input window, operand 0, single buffered']
    #allocation3 [shape = 's32[1]{0}', space=sflag, size = 0x4, scoped, tag = 'scoped memory for tpu_custom_call.1']
    #allocation4 [shape = 's32[1]{0}', space=sflag, size = 0x4, scoped, tag = 'scoped memory for tpu_custom_call.1']
    #allocation5 [shape = 'u8[16384]{0}', space=vmem, size = 0x4000, scoped, tag = 'output window, operand 0, single buffered']
    %6 = vsyncpa [#allocation3], 0
    %7 = vsyncpa [#allocation4], 0
    // Predicated region
    $region2: #{tpu_custom_call.1} parent=1 // pred_check
      _
    $region3: #{tpu_custom_call.1} parent=1 // pred_check_branch
      %9 = sbr.rel (0) target = $region5
    $region4: #{tpu_custom_call.1} parent=1 // pred_region
      %s11 = ssub.s32 512, 512
      %12 = vsyncadd [#allocation3], %s11
      %s13 = sshll.u32 [#allocation2], 4
      %s14 = int_to_ptr.vmem [resolvable:$true] %s13
      %19 = dma.hbm_to_vmem [thread:$0]  %s0, 512, %s14, [#allocation3], 128, 128, 8
    $region5: #{tpu_custom_call.1} parent=1 // pred_fallthru
      _
    // Predicated region
    $region6: #{tpu_custom_call.1} parent=1 // pred_check
      _
    $region7: #{tpu_custom_call.1} parent=1 // pred_check_branch
      %21 = sbr.rel (0) target = $region9
    $region8: #{tpu_custom_call.1} parent=1 // pred_region
      %22 = dma.done [#allocation3], 512
    $region9: #{tpu_custom_call.1} parent=1 // pred_fallthru
      _
    %v23 = vld [vmem:[#allocation2] sm:$0xff]
    %v24 = vld [vmem:[#allocation2 + $0x8] sm:$0xff]
    %v25 = vld [vmem:[#allocation2 + $0x10] sm:$0xff]
    %v26 = vld [vmem:[#allocation2 + $0x18] sm:$0xff]
    %v27 = vrot.slane %v23, 7
    %v28 = vrot.slane %v24, 7
    %v29 = vrot.slane %v25, 7
    %v30 = vrot.slane %v26, 7
    %vm31 = vcmask 64512
    %32 = vst.msk [vmem:[#allocation5] sm:$0xff] %vm31, %v27
    %33 = vst.msk [vmem:[#allocation5 + $0x8] sm:$0xff] %vm31, %v28
    %34 = vst.msk [vmem:[#allocation5 + $0x10] sm:$0xff] %vm31, %v29
    %35 = vst.msk [vmem:[#allocation5 + $0x18] sm:$0xff] %vm31, %v30
    // Predicated region
    $region10: #{tpu_custom_call.1} parent=1 // pred_check
      _
    $region11: #{tpu_custom_call.1} parent=1 // pred_check_branch
      %37 = sbr.rel (0) target = $region13
    $region12: #{tpu_custom_call.1} parent=1 // pred_region
      %s39 = ssub.s32 512, 512
      %40 = vsyncadd [#allocation4], %s39
      %s41 = sshll.u32 [#allocation5], 4
      %s42 = int_to_ptr.vmem [resolvable:$true] %s41
      %47 = dma.vmem_to_hbm [thread:$0]  %s42, 512, %s1, [#allocation4], 128, 128, 8
    $region13: #{tpu_custom_call.1} parent=1 // pred_fallthru
      _
    // Predicated region
    $region14: #{tpu_custom_call.1} parent=1 // pred_check
      _
    $region15: #{tpu_custom_call.1} parent=1 // pred_check_branch
      %49 = sbr.rel (0) target = $region17
    $region16: #{tpu_custom_call.1} parent=1 // pred_region
      %50 = dma.done [#allocation4], 512
    $region17: #{tpu_custom_call.1} parent=1 // pred_fallthru
      _
    %51 = vsyncpa [#allocation3], 1
    %52 = vsyncpa [#allocation4], 1

// kernel: tpu_custom_call.1
$region0: #{tpu_custom_call.1}
  #allocation0 [shape = 'u32[]', space=smem, size = 0x4, offset = 0x4, fixed_abs, tag = 'smem constant byte address 0x4 - core index']
  #allocation1 [shape = 'u32[144,128]{1,0:T(1,128)}', space=vmem, size = 0x12000, scoped, tag = 'internal scratch']
  %s0 = inlined_call_operand.hbm [shape: f32[16,2,128], index: 0, kind: input, shape index: {}]
  %s1 = inlined_call_operand.hbm [shape: f32[16,2,128], index: 1, kind: output, shape index: {}]
  %s2 = sld [smem:[#allocation0]]
  $region18: #{tpu_custom_call.1} parent=0
    _
  %s4 = ssub.s32 1, %s2
  %s5 = scalar_select 0, %s4, %s2
  $region1: #{tpu_custom_call.1} parent=0
    #allocation2 [shape = 'u8[16384]{0}', space=vmem, size = 0x4000, scoped, tag = 'input window, operand 0, single buffered']
    #allocation3 [shape = 's32[1]{0}', space=sflag, size = 0x4, scoped, tag = 'scoped memory for tpu_custom_call.1']
    #allocation4 [shape = 's32[1]{0}', space=sflag, size = 0x4, scoped, tag = 'scoped memory for tpu_custom_call.1']
    #allocation5 [shape = 'u8[16384]{0}', space=vmem, size = 0x4000, scoped, tag = 'output window, operand 0, single buffered']
    %6 = vsyncpa [#allocation3], 0
    %7 = vsyncpa [#allocation4], 0
    // Predicated region
    $region2: #{tpu_custom_call.1} parent=1 // pred_check
      _
    $region3: #{tpu_custom_call.1} parent=1 // pred_check_branch
      %9 = sbr.rel (0) target = $region5
    $region4: #{tpu_custom_call.1} parent=1 // pred_region
      %s11 = ssub.s32 512, 512
      %12 = vsyncadd [#allocation3], %s11
      %s13 = sshll.u32 [#allocation2], 4
      %s14 = int_to_ptr.vmem [resolvable:$true] %s13
      %19 = dma.hbm_to_vmem [thread:$0]  %s0, 512, %s14, [#allocation3], 32, 32, 2
    $region5: #{tpu_custom_call.1} parent=1 // pred_fallthru
      _
    // Predicated region
    $region6: #{tpu_custom_call.1} parent=1 // pred_check
      _
    $region7: #{tpu_custom_call.1} parent=1 // pred_check_branch
      %21 = sbr.rel (0) target = $region9
    $region8: #{tpu_custom_call.1} parent=1 // pred_region
      %22 = dma.done [#allocation3], 512
    $region9: #{tpu_custom_call.1} parent=1 // pred_fallthru
      _
    %v23 = vld [vmem:[#allocation2] sm:$0x1]
    %v24 = vld [vmem:[#allocation2 + $0x2] sm:$0x1]
    %v25 = vld [vmem:[#allocation2 + $0x4] sm:$0x1]
    %v26 = vld [vmem:[#allocation2 + $0x6] sm:$0x1]
    %v27 = vld [vmem:[#allocation2 + $0x8] sm:$0x1]
    %v28 = vld [vmem:[#allocation2 + $0xa] sm:$0x1]
    %v29 = vld [vmem:[#allocation2 + $0xc] sm:$0x1]
    %v30 = vld [vmem:[#allocation2 + $0xe] sm:$0x1]
    %v31 = vld [vmem:[#allocation2 + $0x10] sm:$0x1]
    %v32 = vld [vmem:[#allocation2 + $0x12] sm:$0x1]
    %v33 = vld [vmem:[#allocation2 + $0x14] sm:$0x1]
    %v34 = vld [vmem:[#allocation2 + $0x16] sm:$0x1]
    %v35 = vld [vmem:[#allocation2 + $0x18] sm:$0x1]
    %v36 = vld [vmem:[#allocation2 + $0x1a] sm:$0x1]
    %v37 = vld [vmem:[#allocation2 + $0x1c] sm:$0x1]
    %v38 = vld [vmem:[#allocation2 + $0x1e] sm:$0x1]
    %v39 = vmul.f32 %v23, 2.0
    %v40 = vmul.f32 %v24, 2.0
    %v41 = vmul.f32 %v25, 2.0
    %v42 = vmul.f32 %v26, 2.0
    %v43 = vmul.f32 %v27, 2.0
    %v44 = vmul.f32 %v28, 2.0
    %v45 = vmul.f32 %v29, 2.0
    %v46 = vmul.f32 %v30, 2.0
    %v47 = vmul.f32 %v31, 2.0
    %v48 = vmul.f32 %v32, 2.0
    %v49 = vmul.f32 %v33, 2.0
    %v50 = vmul.f32 %v34, 2.0
    %v51 = vmul.f32 %v35, 2.0
    %v52 = vmul.f32 %v36, 2.0
    %v53 = vmul.f32 %v37, 2.0
    %v54 = vmul.f32 %v38, 2.0
    %55 = vst [vmem:[#allocation5] sm:$0x1] %v39
    %56 = vst [vmem:[#allocation5 + $0x2] sm:$0x1] %v40
    %57 = vst [vmem:[#allocation5 + $0x4] sm:$0x1] %v41
    %58 = vst [vmem:[#allocation5 + $0x6] sm:$0x1] %v42
    %59 = vst [vmem:[#allocation5 + $0x8] sm:$0x1] %v43
    %60 = vst [vmem:[#allocation5 + $0xa] sm:$0x1] %v44
    %61 = vst [vmem:[#allocation5 + $0xc] sm:$0x1] %v45
    %62 = vst [vmem:[#allocation5 + $0xe] sm:$0x1] %v46
    %63 = vst [vmem:[#allocation5 + $0x10] sm:$0x1] %v47
    %64 = vst [vmem:[#allocation5 + $0x12] sm:$0x1] %v48
    %65 = vst [vmem:[#allocation5 + $0x14] sm:$0x1] %v49
    %66 = vst [vmem:[#allocation5 + $0x16] sm:$0x1] %v50
    %67 = vst [vmem:[#allocation5 + $0x18] sm:$0x1] %v51
    %68 = vst [vmem:[#allocation5 + $0x1a] sm:$0x1] %v52
    %69 = vst [vmem:[#allocation5 + $0x1c] sm:$0x1] %v53
    %70 = vst [vmem:[#allocation5 + $0x1e] sm:$0x1] %v54
    %v71 = vld [vmem:[#allocation2 + $0x1] sm:$0x1]
    %v72 = vld [vmem:[#allocation2 + $0x3] sm:$0x1]
    %v73 = vld [vmem:[#allocation2 + $0x5] sm:$0x1]
    %v74 = vld [vmem:[#allocation2 + $0x7] sm:$0x1]
    %v75 = vld [vmem:[#allocation2 + $0x9] sm:$0x1]
    %v76 = vld [vmem:[#allocation2 + $0xb] sm:$0x1]
    %v77 = vld [vmem:[#allocation2 + $0xd] sm:$0x1]
    %v78 = vld [vmem:[#allocation2 + $0xf] sm:$0x1]
    %v79 = vld [vmem:[#allocation2 + $0x11] sm:$0x1]
    %v80 = vld [vmem:[#allocation2 + $0x13] sm:$0x1]
    %v81 = vld [vmem:[#allocation2 + $0x15] sm:$0x1]
    %v82 = vld [vmem:[#allocation2 + $0x17] sm:$0x1]
    %v83 = vld [vmem:[#allocation2 + $0x19] sm:$0x1]
    %v84 = vld [vmem:[#allocation2 + $0x1b] sm:$0x1]
    %v85 = vld [vmem:[#allocation2 + $0x1d] sm:$0x1]
    %v86 = vld [vmem:[#allocation2 + $0x1f] sm:$0x1]
    %v87 = vmul.f32 %v71, 2.0
    %v88 = vmul.f32 %v72, 2.0
    %v89 = vmul.f32 %v73, 2.0
    %v90 = vmul.f32 %v74, 2.0
    %v91 = vmul.f32 %v75, 2.0
    %v92 = vmul.f32 %v76, 2.0
    %v93 = vmul.f32 %v77, 2.0
    %v94 = vmul.f32 %v78, 2.0
    %v95 = vmul.f32 %v79, 2.0
    %v96 = vmul.f32 %v80, 2.0
    %v97 = vmul.f32 %v81, 2.0
    %v98 = vmul.f32 %v82, 2.0
    %v99 = vmul.f32 %v83, 2.0
    %v100 = vmul.f32 %v84, 2.0
    %v101 = vmul.f32 %v85, 2.0
    %v102 = vmul.f32 %v86, 2.0
    %103 = vst [vmem:[#allocation5 + $0x1] sm:$0x1] %v87
    %104 = vst [vmem:[#allocation5 + $0x3] sm:$0x1] %v88
    %105 = vst [vmem:[#allocation5 + $0x5] sm:$0x1] %v89
    %106 = vst [vmem:[#allocation5 + $0x7] sm:$0x1] %v90
    %107 = vst [vmem:[#allocation5 + $0x9] sm:$0x1] %v91
    %108 = vst [vmem:[#allocation5 + $0xb] sm:$0x1] %v92
    %109 = vst [vmem:[#allocation5 + $0xd] sm:$0x1] %v93
    %110 = vst [vmem:[#allocation5 + $0xf] sm:$0x1] %v94
    %111 = vst [vmem:[#allocation5 + $0x11] sm:$0x1] %v95
    %112 = vst [vmem:[#allocation5 + $0x13] sm:$0x1] %v96
    %113 = vst [vmem:[#allocation5 + $0x15] sm:$0x1] %v97
    %114 = vst [vmem:[#allocation5 + $0x17] sm:$0x1] %v98
    %115 = vst [vmem:[#allocation5 + $0x19] sm:$0x1] %v99
    %116 = vst [vmem:[#allocation5 + $0x1b] sm:$0x1] %v100
    %117 = vst [vmem:[#allocation5 + $0x1d] sm:$0x1] %v101
    %118 = vst [vmem:[#allocation5 + $0x1f] sm:$0x1] %v102
    // Predicated region
    $region10: #{tpu_custom_call.1} parent=1 // pred_check
      _
    $region11: #{tpu_custom_call.1} parent=1 // pred_check_branch
      %120 = sbr.rel (0) target = $region13
    $region12: #{tpu_custom_call.1} parent=1 // pred_region
      %s122 = ssub.s32 512, 512
      %123 = vsyncadd [#allocation4], %s122
      %s124 = sshll.u32 [#allocation5], 4
      %s125 = int_to_ptr.vmem [resolvable:$true] %s124
      %130 = dma.vmem_to_hbm [thread:$0]  %s125, 512, %s1, [#allocation4], 32, 32, 2
    $region13: #{tpu_custom_call.1} parent=1 // pred_fallthru
      _
    // Predicated region
    $region14: #{tpu_custom_call.1} parent=1 // pred_check
      _
    $region15: #{tpu_custom_call.1} parent=1 // pred_check_branch
      %132 = sbr.rel (0) target = $region17
    $region16: #{tpu_custom_call.1} parent=1 // pred_region
      %133 = dma.done [#allocation4], 512
    $region17: #{tpu_custom_call.1} parent=1 // pred_fallthru
      _
    %134 = vsyncpa [#allocation3], 1
    %135 = vsyncpa [#allocation4], 1

// kernel: _dispatcher_forward.3
$region0: #{_dispatcher_forward.3}
  #allocation0 [shape = 'u32[]', space=smem, size = 0x4, offset = 0x4, fixed_abs, tag = 'smem constant byte address 0x4 - core index']
  #allocation1 [shape = 'u32[144,128]{1,0:T(1,128)}', space=vmem, size = 0x12000, scoped, tag = 'internal scratch']
  %s0 = inlined_call_operand.vmem [shape: bf16[16,32], index: 0, kind: input, shape index: {}]
  %s1 = inlined_call_operand.vmem [shape: bf16[32,44], index: 1, kind: input, shape index: {}]
  %s2 = inlined_call_operand.vmem [shape: f32[16,32], index: 2, kind: output, shape index: {0}]
  %s3 = inlined_call_operand.vmem [shape: f32[16,12], index: 3, kind: output, shape index: {1}]
  %4 = xla_tuple %s2, %s3
  %s5 = sld [smem:[#allocation0]]
  $region49: #{_dispatcher_forward.3} parent=0
    _
  %s7 = ssub.s32 1, %s5
  %s8 = scalar_select 0, %s7, %s5
  loop: start=0, step=1, limit=4
  $region2: #{_dispatcher_forward.3} parent=0 // loop_pre_header
    _
  $region3: #{_dispatcher_forward.3} parent=0 // loop_header
    %s10 = sphi 0, %s14
    %p11 = scmp.ge.s32.totalorder %s10, 4
    %s20 = sphi 0, %s22
    %s23 = sphi 0, %s20
    %s24 = sphi 0, %s23
    %s40 = sphi 0, %s24
    %s44 = sphi 0, %s44
    %s46 = sphi 0, %s44
    %s47 = sphi 0, %s46
    %s61 = sphi 0, %s47
    %s67 = sphi 0, %s69
    %s70 = sphi 0, %s67
    %s71 = sphi 0, %s70
    %s87 = sphi 0, %s71
    %s93 = sphi 0, %s95
    %s96 = sphi 0, %s93
    %s97 = sphi 0, %s96
    %s113 = sphi 0, %s97
  $region4: #{_dispatcher_forward.3} parent=0 // loop_header_branch
    %13 = sbr.rel (%p11) target = $region8
  $region5: #{_dispatcher_forward.3} parent=0 // loop_body
    %s15 = ssub.s32 %s10, 1
    %s16 = ssub.s32 %s10, 2
    %s17 = sadd.s32 %s10, 1
    %s18 = ssub.s32 %s10, %s17
    %p19 = scmp.eq.s32.totalorder %s18, 0
    %s21 = sadd.s32 %s20, 1
    %s22 = scalar_select %p19, %s20, %s21
    %p25 = pneg %p19
    %p26 = scmp.eq.s32.totalorder %s10, 1
    %p27 = por %p25, %p26
    %p28 = scmp.ne.s32.totalorder %s20, %s23
    %p29 = scmp.eq.s32.totalorder %s10, 0
    %p30 = por %p28, %p29
    %p31 = scmp.ne.s32.totalorder %s20, %s23
    %p32 = scmp.eq.s32.totalorder %s15, 1
    %p33 = por %p31, %p32
    %p34 = scmp.ne.s32.totalorder %s23, %s24
    %p35 = scmp.eq.s32.totalorder %s15, 0
    %p36 = por %p34, %p35
    %p37 = scmp.ne.s32.totalorder %s23, %s24
    %p38 = scmp.eq.s32.totalorder %s16, 1
    %p39 = por %p37, %p38
    %p41 = scmp.ne.s32.totalorder %s24, %s40
    %p42 = scmp.eq.s32.totalorder %s16, 0
    %p43 = por %p41, %p42
    %s45 = sadd.s32 %s44, 1
    %p48 = scmp.eq.s32.totalorder %s10, 1
    %p49 = scmp.ne.s32.totalorder %s44, %s46
    %p50 = scmp.eq.s32.totalorder %s10, 0
    %p51 = por %p49, %p50
    %p52 = scmp.ne.s32.totalorder %s44, %s46
    %p53 = scmp.eq.s32.totalorder %s15, 1
    %p54 = por %p52, %p53
    %p55 = scmp.ne.s32.totalorder %s46, %s47
    %p56 = scmp.eq.s32.totalorder %s15, 0
    %p57 = por %p55, %p56
    %p58 = scmp.ne.s32.totalorder %s46, %s47
    %p59 = scmp.eq.s32.totalorder %s16, 1
    %p60 = por %p58, %p59
    %p62 = scmp.ne.s32.totalorder %s47, %s61
    %p63 = scmp.eq.s32.totalorder %s16, 0
    %p64 = por %p62, %p63
    %s65 = ssub.s32 %s10, %s17
    %p66 = scmp.eq.s32.totalorder %s65, 0
    %s68 = sadd.s32 %s67, 1
    %s69 = scalar_select %p66, %s67, %s68
    %p72 = pneg %p66
    %p73 = scmp.eq.s32.totalorder %s10, 1
    %p74 = por %p72, %p73
    %p75 = scmp.ne.s32.totalorder %s67, %s70
    %p76 = scmp.eq.s32.totalorder %s10, 0
    %p77 = por %p75, %p76
    %p78 = scmp.ne.s32.totalorder %s67, %s70
    %p79 = scmp.eq.s32.totalorder %s15, 1
    %p80 = por %p78, %p79
    %p81 = scmp.ne.s32.totalorder %s70, %s71
    %p82 = scmp.eq.s32.totalorder %s15, 0
    %p83 = por %p81, %p82
    %p84 = scmp.ne.s32.totalorder %s70, %s71
    %p85 = scmp.eq.s32.totalorder %s16, 1
    %p86 = por %p84, %p85
    %p88 = scmp.ne.s32.totalorder %s71, %s87
    %p89 = scmp.eq.s32.totalorder %s16, 0
    %p90 = por %p88, %p89
    %s91 = ssub.s32 %s10, %s17
    %p92 = scmp.eq.s32.totalorder %s91, 0
    %s94 = sadd.s32 %s93, 1
    %s95 = scalar_select %p92, %s93, %s94
    %p98 = pneg %p92
    %p99 = scmp.eq.s32.totalorder %s10, 1
    %p100 = por %p98, %p99
    %p101 = scmp.ne.s32.totalorder %s93, %s96
    %p102 = scmp.eq.s32.totalorder %s10, 0
    %p103 = por %p101, %p102
    %p104 = scmp.ne.s32.totalorder %s93, %s96
    %p105 = scmp.eq.s32.totalorder %s15, 1
    %p106 = por %p104, %p105
    %p107 = scmp.ne.s32.totalorder %s96, %s97
    %p108 = scmp.eq.s32.totalorder %s15, 0
    %p109 = por %p107, %p108
    %p110 = scmp.ne.s32.totalorder %s96, %s97
    %p111 = scmp.eq.s32.totalorder %s16, 1
    %p112 = por %p110, %p111
    %p114 = scmp.ne.s32.totalorder %s97, %s113
    %p115 = scmp.eq.s32.totalorder %s16, 0
    %p116 = por %p114, %p115
    %p117 = scmp.le.s32.totalorder 1, %s10
    %p118 = scmp.lt.s32.totalorder %s10, 3
    %p119 = pnand %p117, %p118
    %p120 = pneg %p119
    // Predicated region
    $region9: #{_dispatcher_forward.3} parent=5 // pred_check
      _
    $region10: #{_dispatcher_forward.3} parent=5 // pred_check_branch
      %122 = sbr.rel (%p119) target = $region12
    $region11: #{_dispatcher_forward.3} parent=5 // pred_region
      %s123 = ssub.s32 %s10, 1
      // Predicated region
      $region13: #{_dispatcher_forward.3} parent=11 // pred_check
        %p124 = pneg %p57
      $region14: #{_dispatcher_forward.3} parent=11 // pred_check_branch
        %126 = sbr.rel (%p124) target = $region16
      $region15: #{_dispatcher_forward.3} parent=11 // pred_region
        _
      $region16: #{_dispatcher_forward.3} parent=11 // pred_fallthru
        _
    $region12: #{_dispatcher_forward.3} parent=5 // pred_fallthru
      _
    %p127 = scmp.lt.s32.totalorder %s10, 2
    // Predicated region
    $region17: #{_dispatcher_forward.3} parent=5 // pred_check
      %p128 = pneg %p127
    $region18: #{_dispatcher_forward.3} parent=5 // pred_check_branch
      %130 = sbr.rel (%p128) target = $region20
    $region19: #{_dispatcher_forward.3} parent=5 // pred_region
      // Predicated region
      $region21: #{_dispatcher_forward.3} parent=19 // pred_check
        %p131 = pneg %p30
      $region22: #{_dispatcher_forward.3} parent=19 // pred_check_branch
        %133 = sbr.rel (%p131) target = $region24
      $region23: #{_dispatcher_forward.3} parent=19 // pred_region
        %p134 = scmp.lt.s32.totalorder %s10, 1
        %s135 = scalar_select %p134, %s10, 1
        %s136 = smul.addr %s135, 4
        %s137 = scalar_lea.vmem %s0, %s136
      $region24: #{_dispatcher_forward.3} parent=19 // pred_fallthru
        _
    $region20: #{_dispatcher_forward.3} parent=5 // pred_fallthru
      _
    %p138 = scmp.le.s32.totalorder 1, %s10
    %p139 = scmp.lt.s32.totalorder %s10, 3
    %p140 = pnand %p138, %p139
    %p141 = pneg %p140
    // Predicated region
    $region25: #{_dispatcher_forward.3} parent=5 // pred_check
      _
    $region26: #{_dispatcher_forward.3} parent=5 // pred_check_branch
      %143 = sbr.rel (%p140) target = $region28
    $region27: #{_dispatcher_forward.3} parent=5 // pred_region
      %s144 = ssub.s32 %s10, 1
      %p145 = scmp.lt.s32.totalorder %s15, 1
      %s146 = scalar_select %p145, %s15, 1
      %s147 = smul.addr %s146, 4
      %s148 = scalar_lea.vmem %s0, %s147
      %p149 = pneg %p36
      %p150 = pneg %p33
      %p151 = pneg %p57
      %p152 = pneg %p54
      %p153 = pneg %p83
      %p154 = pneg %p80
      %p155 = scmp.lt.s32.totalorder %s15, 1
      %s156 = scalar_select %p155, %s15, 1
      %s157 = smul.addr %s156, 8
      %s158 = scalar_lea.vmem %s2, %s157
      %p159 = pneg %p109
      %p160 = pneg %p106
      %p161 = scmp.lt.s32.totalorder %s15, 1
      %s162 = scalar_select %p161, %s15, 1
      %s163 = smul.addr %s162, 8
      %s164 = scalar_lea.vmem %s3, %s163
      %p165 = scmp.lt.s32.totalorder %s15, 1
      %s166 = scalar_select %p165, %s15, 1
      %s167 = smul.addr %s166, 4
      %s168 = scalar_lea.vmem %s0, %s167
      %p169 = scmp.lt.s32.totalorder %s15, 1
      %s170 = scalar_select %p169, %s15, 1
      %s171 = smul.addr %s170, 8
      %s172 = scalar_lea.vmem %s2, %s171
      %p173 = scmp.lt.s32.totalorder %s15, 1
      %s174 = scalar_select %p173, %s15, 1
      %s175 = smul.addr %s174, 8
      %s176 = scalar_lea.vmem %s3, %s175
      %v178 = vld [vmem:[%s168] sm:$0xf]
      %v179 = vld [vmem:[%s1] sm:$0xf]
      %v180 = vld [vmem:[%s1 + $0x4] sm:$0xf]
      %v181 = vld [vmem:[%s1 + $0x8] sm:$0xf]
      %v182 = vld [vmem:[%s1 + $0xc] sm:$0xf]
      %v187 = vunpack.c.l.b16 %v179
      %v188 = vunpack.c.l.b16 %v180
      %v189 = vunpack.c.l.b16 %v181
      %v190 = vunpack.c.l.b16 %v182
      %v191 = vpack.c.b16 %v188, %v187
      %v192 = vpack.c.b16 %v190, %v189
      %vm195 = vcmask 261120
      %v197 = vsel %vm195, %v178, 0
      %199 = vmatprep.subr.bf16.mxu0 0
      %200 = vmatpush1.bf16.msra.mxu0 %v191
      %201 = vmatprep.subr.bf16.mxu0 0
      %202 = vmatpush1.bf16.msra.mxu0 %v192
      %203 = vmatprep.subr.bf16.mxu0 0
      %204 = vmatpush1.bf16.msra.mxu0 0
      %205 = vmatprep.subr.bf16.mxu0 0
      %206 = vmatpush1.bf16.msra.mxu0 0
      %207 = vmatprep.subr.bf16.mxu0 0
      %208 = vmatpush1.bf16.msra.mxu0 0
      %209 = vmatprep.subr.bf16.mxu0 0
      %210 = vmatpush1.bf16.msra.mxu0 0
      %211 = vmatprep.subr.bf16.mxu0 0
      %212 = vmatpush1.bf16.msra.mxu0 0
      %213 = vmatprep.subr.bf16.mxu0 0
      %214 = vmatpush1.bf16.msra.mxu0 0
      %215 = vmatprep.subr.bf16.mxu0 0
      %216 = vmatpush1.bf16.msra.mxu0 0
      %217 = vmatprep.subr.bf16.mxu0 0
      %218 = vmatpush1.bf16.msra.mxu0 0
      %219 = vmatprep.subr.bf16.mxu0 0
      %220 = vmatpush1.bf16.msra.mxu0 0
      %221 = vmatprep.subr.bf16.mxu0 0
      %222 = vmatpush1.bf16.msra.mxu0 0
      %223 = vmatprep.subr.bf16.mxu0 0
      %224 = vmatpush1.bf16.msra.mxu0 0
      %225 = vmatprep.subr.bf16.mxu0 0
      %226 = vmatpush1.bf16.msra.mxu0 0
      %227 = vmatprep.subr.bf16.mxu0 0
      %228 = vmatpush1.bf16.msra.mxu0 0
      %229 = vmatprep.subr.bf16.mxu0 0
      %230 = vmatpush1.bf16.msra.mxu0 0
      %231 = vmatprep.mubr.bf16.mxu0 0
      %232 = vmatmul.mubr.bf16.gmra.mrb[0].mxu0 %v197
      %v233 = vpop.f32.mrb[0].mxu0
      %v234 = vadd.f32 0.0, %v233
      %v235 = vpop.f32.mrb[0].mxu0
      %v236 = vpop.f32.mrb[0].mxu0
      %v237 = vpop.f32.mrb[0].mxu0
      %238 = vdwg.mxu0
      %239 = vst.msk [vmem:[%s172] sm:$0xff] %vm195, %v234
      %241 = vrot.lane.b32.xlu0 %v234, 96
      %v242 = vpop.permute.xlu0 %241
      %vm244 = vcmask 97280
      %245 = vst.msk [vmem:[%s176] sm:$0xff] %vm244, %v242
      %p246 = scmp.lt.s32.totalorder %s15, 1
      %s247 = scalar_select %p246, %s15, 1
      %s248 = smul.addr %s247, 8
      %s249 = scalar_lea.vmem %s2, %s248
      %p250 = scmp.lt.s32.totalorder %s15, 1
      %s251 = scalar_select %p250, %s15, 1
      %s252 = smul.addr %s251, 8
      %s253 = scalar_lea.vmem %s3, %s252
      // Predicated region
      $region29: #{_dispatcher_forward.3} parent=27 // pred_check
        %p254 = pneg %p80
      $region30: #{_dispatcher_forward.3} parent=27 // pred_check_branch
        %256 = sbr.rel (%p254) target = $region32
      $region31: #{_dispatcher_forward.3} parent=27 // pred_region
        _
      $region32: #{_dispatcher_forward.3} parent=27 // pred_fallthru
        _
      // Predicated region
      $region33: #{_dispatcher_forward.3} parent=27 // pred_check
        %p257 = pneg %p106
      $region34: #{_dispatcher_forward.3} parent=27 // pred_check_branch
        %259 = sbr.rel (%p257) target = $region36
      $region35: #{_dispatcher_forward.3} parent=27 // pred_region
        _
      $region36: #{_dispatcher_forward.3} parent=27 // pred_fallthru
        _
    $region28: #{_dispatcher_forward.3} parent=5 // pred_fallthru
      _
    %p260 = scmp.le.s32.totalorder 2, %s10
    // Predicated region
    $region37: #{_dispatcher_forward.3} parent=5 // pred_check
      %p261 = pneg %p260
    $region38: #{_dispatcher_forward.3} parent=5 // pred_check_branch
      %263 = sbr.rel (%p261) target = $region40
    $region39: #{_dispatcher_forward.3} parent=5 // pred_region
      %s264 = ssub.s32 %s10, 2
      // Predicated region
      $region41: #{_dispatcher_forward.3} parent=39 // pred_check
        %p265 = pneg %p86
      $region42: #{_dispatcher_forward.3} parent=39 // pred_check_branch
        %267 = sbr.rel (%p265) target = $region44
      $region43: #{_dispatcher_forward.3} parent=39 // pred_region
        %p268 = scmp.lt.s32.totalorder %s16, 1
        %s269 = scalar_select %p268, %s16, 1
        %s270 = smul.addr %s269, 8
        %s271 = scalar_lea.vmem %s2, %s270
      $region44: #{_dispatcher_forward.3} parent=39 // pred_fallthru
        _
      // Predicated region
      $region45: #{_dispatcher_forward.3} parent=39 // pred_check
        %p272 = pneg %p112
      $region46: #{_dispatcher_forward.3} parent=39 // pred_check_branch
        %274 = sbr.rel (%p272) target = $region48
      $region47: #{_dispatcher_forward.3} parent=39 // pred_region
        %p275 = scmp.lt.s32.totalorder %s16, 1
        %s276 = scalar_select %p275, %s16, 1
        %s277 = smul.addr %s276, 8
        %s278 = scalar_lea.vmem %s3, %s277
      $region48: #{_dispatcher_forward.3} parent=39 // pred_fallthru
        _
    $region40: #{_dispatcher_forward.3} parent=5 // pred_fallthru
      _
  $region6: #{_dispatcher_forward.3} parent=0 // loop_footer
    %s14 = sadd.s32 1, %s10
  $region7: #{_dispatcher_forward.3} parent=0 // loop_footer_branch
    %9 = sbr.rel target = $region3
  $region8: #{_dispatcher_forward.3} parent=0 // loop_exit
    _

// kernel: _dispatcher_forward.4
$region0: #{_dispatcher_forward.4}
  #allocation0 [shape = 'u32[]', space=smem, size = 0x4, offset = 0x4, fixed_abs, tag = 'smem constant byte address 0x4 - core index']
  #allocation1 [shape = 'u32[144,128]{1,0:T(1,128)}', space=vmem, size = 0x12000, scoped, tag = 'internal scratch']
  %s0 = inlined_call_operand.vmem [shape: f32[8,8,8], index: 0, kind: input, shape index: {}]
  %s1 = inlined_call_operand.vmem [shape: f32[8,8,3], index: 1, kind: input, shape index: {}]
  %s2 = inlined_call_operand.vmem [shape: f32[8,8,3], index: 2, kind: input, shape index: {}]
  %s3 = inlined_call_operand.vmem [shape: bf16[8,8,8], index: 3, kind: output, shape index: {}]
  %s4 = sld [smem:[#allocation0]]
  $region45: #{_dispatcher_forward.4} parent=0
    _
  %s6 = ssub.s32 1, %s4
  %s7 = scalar_select 0, %s6, %s4
  loop: start=0, step=1, limit=4
  $region2: #{_dispatcher_forward.4} parent=0 // loop_pre_header
    _
  $region3: #{_dispatcher_forward.4} parent=0 // loop_header
    %s9 = sphi 0, %s13
    %p10 = scmp.ge.s32.totalorder %s9, 4
    %s19 = sphi 0, %s21
    %s22 = sphi 0, %s19
    %s23 = sphi 0, %s22
    %s39 = sphi 0, %s23
    %s45 = sphi 0, %s47
    %s48 = sphi 0, %s45
    %s49 = sphi 0, %s48
    %s65 = sphi 0, %s49
    %s71 = sphi 0, %s73
    %s74 = sphi 0, %s71
    %s75 = sphi 0, %s74
    %s91 = sphi 0, %s75
    %s97 = sphi 0, %s99
    %s100 = sphi 0, %s97
    %s101 = sphi 0, %s100
    %s117 = sphi 0, %s101
  $region4: #{_dispatcher_forward.4} parent=0 // loop_header_branch
    %12 = sbr.rel (%p10) target = $region8
  $region5: #{_dispatcher_forward.4} parent=0 // loop_body
    %s14 = ssub.s32 %s9, 1
    %s15 = ssub.s32 %s9, 2
    %s16 = sadd.s32 %s9, 1
    %s17 = ssub.s32 %s9, %s16
    %p18 = scmp.eq.s32.totalorder %s17, 0
    %s20 = sadd.s32 %s19, 1
    %s21 = scalar_select %p18, %s19, %s20
    %p24 = pneg %p18
    %p25 = scmp.eq.s32.totalorder %s9, 1
    %p26 = por %p24, %p25
    %p27 = scmp.ne.s32.totalorder %s19, %s22
    %p28 = scmp.eq.s32.totalorder %s9, 0
    %p29 = por %p27, %p28
    %p30 = scmp.ne.s32.totalorder %s19, %s22
    %p31 = scmp.eq.s32.totalorder %s14, 1
    %p32 = por %p30, %p31
    %p33 = scmp.ne.s32.totalorder %s22, %s23
    %p34 = scmp.eq.s32.totalorder %s14, 0
    %p35 = por %p33, %p34
    %p36 = scmp.ne.s32.totalorder %s22, %s23
    %p37 = scmp.eq.s32.totalorder %s15, 1
    %p38 = por %p36, %p37
    %p40 = scmp.ne.s32.totalorder %s23, %s39
    %p41 = scmp.eq.s32.totalorder %s15, 0
    %p42 = por %p40, %p41
    %s43 = ssub.s32 %s9, %s16
    %p44 = scmp.eq.s32.totalorder %s43, 0
    %s46 = sadd.s32 %s45, 1
    %s47 = scalar_select %p44, %s45, %s46
    %p50 = pneg %p44
    %p51 = scmp.eq.s32.totalorder %s9, 1
    %p52 = por %p50, %p51
    %p53 = scmp.ne.s32.totalorder %s45, %s48
    %p54 = scmp.eq.s32.totalorder %s9, 0
    %p55 = por %p53, %p54
    %p56 = scmp.ne.s32.totalorder %s45, %s48
    %p57 = scmp.eq.s32.totalorder %s14, 1
    %p58 = por %p56, %p57
    %p59 = scmp.ne.s32.totalorder %s48, %s49
    %p60 = scmp.eq.s32.totalorder %s14, 0
    %p61 = por %p59, %p60
    %p62 = scmp.ne.s32.totalorder %s48, %s49
    %p63 = scmp.eq.s32.totalorder %s15, 1
    %p64 = por %p62, %p63
    %p66 = scmp.ne.s32.totalorder %s49, %s65
    %p67 = scmp.eq.s32.totalorder %s15, 0
    %p68 = por %p66, %p67
    %s69 = ssub.s32 %s9, %s16
    %p70 = scmp.eq.s32.totalorder %s69, 0
    %s72 = sadd.s32 %s71, 1
    %s73 = scalar_select %p70, %s71, %s72
    %p76 = pneg %p70
    %p77 = scmp.eq.s32.totalorder %s9, 1
    %p78 = por %p76, %p77
    %p79 = scmp.ne.s32.totalorder %s71, %s74
    %p80 = scmp.eq.s32.totalorder %s9, 0
    %p81 = por %p79, %p80
    %p82 = scmp.ne.s32.totalorder %s71, %s74
    %p83 = scmp.eq.s32.totalorder %s14, 1
    %p84 = por %p82, %p83
    %p85 = scmp.ne.s32.totalorder %s74, %s75
    %p86 = scmp.eq.s32.totalorder %s14, 0
    %p87 = por %p85, %p86
    %p88 = scmp.ne.s32.totalorder %s74, %s75
    %p89 = scmp.eq.s32.totalorder %s15, 1
    %p90 = por %p88, %p89
    %p92 = scmp.ne.s32.totalorder %s75, %s91
    %p93 = scmp.eq.s32.totalorder %s15, 0
    %p94 = por %p92, %p93
    %s95 = ssub.s32 %s9, %s16
    %p96 = scmp.eq.s32.totalorder %s95, 0
    %s98 = sadd.s32 %s97, 1
    %s99 = scalar_select %p96, %s97, %s98
    %p102 = pneg %p96
    %p103 = scmp.eq.s32.totalorder %s9, 1
    %p104 = por %p102, %p103
    %p105 = scmp.ne.s32.totalorder %s97, %s100
    %p106 = scmp.eq.s32.totalorder %s9, 0
    %p107 = por %p105, %p106
    %p108 = scmp.ne.s32.totalorder %s97, %s100
    %p109 = scmp.eq.s32.totalorder %s14, 1
    %p110 = por %p108, %p109
    %p111 = scmp.ne.s32.totalorder %s100, %s101
    %p112 = scmp.eq.s32.totalorder %s14, 0
    %p113 = por %p111, %p112
    %p114 = scmp.ne.s32.totalorder %s100, %s101
    %p115 = scmp.eq.s32.totalorder %s15, 1
    %p116 = por %p114, %p115
    %p118 = scmp.ne.s32.totalorder %s101, %s117
    %p119 = scmp.eq.s32.totalorder %s15, 0
    %p120 = por %p118, %p119
    %p121 = scmp.le.s32.totalorder 1, %s9
    %p122 = scmp.lt.s32.totalorder %s9, 3
    %p123 = pnand %p121, %p122
    %p124 = pneg %p123
    // Predicated region
    $region9: #{_dispatcher_forward.4} parent=5 // pred_check
      _
    $region10: #{_dispatcher_forward.4} parent=5 // pred_check_branch
      %126 = sbr.rel (%p123) target = $region12
    $region11: #{_dispatcher_forward.4} parent=5 // pred_region
      %s127 = ssub.s32 %s9, 1
    $region12: #{_dispatcher_forward.4} parent=5 // pred_fallthru
      _
    %p128 = scmp.lt.s32.totalorder %s9, 2
    // Predicated region
    $region13: #{_dispatcher_forward.4} parent=5 // pred_check
      %p129 = pneg %p128
    $region14: #{_dispatcher_forward.4} parent=5 // pred_check_branch
      %131 = sbr.rel (%p129) target = $region16
    $region15: #{_dispatcher_forward.4} parent=5 // pred_region
      // Predicated region
      $region17: #{_dispatcher_forward.4} parent=15 // pred_check
        %p132 = pneg %p29
      $region18: #{_dispatcher_forward.4} parent=15 // pred_check_branch
        %134 = sbr.rel (%p132) target = $region20
      $region19: #{_dispatcher_forward.4} parent=15 // pred_region
        %s135 = smul.u32 4, %s9
        %p136 = scmp.lt.s32.totalorder %s135, 7
        %s137 = scalar_select %p136, %s135, 7
        %s138 = smul.addr %s137, 8
        %s139 = scalar_lea.vmem %s0, %s138
        %s140 = smul.u32 4, %s9
      $region20: #{_dispatcher_forward.4} parent=15 // pred_fallthru
        _
      // Predicated region
      $region21: #{_dispatcher_forward.4} parent=15 // pred_check
        %p141 = pneg %p55
      $region22: #{_dispatcher_forward.4} parent=15 // pred_check_branch
        %143 = sbr.rel (%p141) target = $region24
      $region23: #{_dispatcher_forward.4} parent=15 // pred_region
        %s144 = smul.u32 4, %s9
        %p145 = scmp.lt.s32.totalorder %s144, 7
        %s146 = scalar_select %p145, %s144, 7
        %s147 = smul.addr %s146, 8
        %s148 = scalar_lea.vmem %s1, %s147
        %s149 = smul.u32 4, %s9
      $region24: #{_dispatcher_forward.4} parent=15 // pred_fallthru
        _
      // Predicated region
      $region25: #{_dispatcher_forward.4} parent=15 // pred_check
        %p150 = pneg %p81
      $region26: #{_dispatcher_forward.4} parent=15 // pred_check_branch
        %152 = sbr.rel (%p150) target = $region28
      $region27: #{_dispatcher_forward.4} parent=15 // pred_region
        %s153 = smul.u32 4, %s9
        %p154 = scmp.lt.s32.totalorder %s153, 7
        %s155 = scalar_select %p154, %s153, 7
        %s156 = smul.addr %s155, 8
        %s157 = scalar_lea.vmem %s2, %s156
        %s158 = smul.u32 4, %s9
      $region28: #{_dispatcher_forward.4} parent=15 // pred_fallthru
        _
    $region16: #{_dispatcher_forward.4} parent=5 // pred_fallthru
      _
    %p159 = scmp.le.s32.totalorder 1, %s9
    %p160 = scmp.lt.s32.totalorder %s9, 3
    %p161 = pnand %p159, %p160
    %p162 = pneg %p161
    // Predicated region
    $region29: #{_dispatcher_forward.4} parent=5 // pred_check
      _
    $region30: #{_dispatcher_forward.4} parent=5 // pred_check_branch
      %164 = sbr.rel (%p161) target = $region32
    $region31: #{_dispatcher_forward.4} parent=5 // pred_region
      %s165 = ssub.s32 %s9, 1
      %s166 = smul.u32 4, %s14
      %p167 = scmp.lt.s32.totalorder %s166, 7
      %s168 = scalar_select %p167, %s166, 7
      %s169 = smul.addr %s168, 8
      %s170 = scalar_lea.vmem %s0, %s169
      %p171 = pneg %p35
      %p172 = pneg %p32
      %s173 = smul.u32 4, %s14
      %p174 = scmp.lt.s32.totalorder %s173, 7
      %s175 = scalar_select %p174, %s173, 7
      %s176 = smul.addr %s175, 8
      %s177 = scalar_lea.vmem %s1, %s176
      %p178 = pneg %p61
      %p179 = pneg %p58
      %s180 = smul.u32 4, %s14
      %p181 = scmp.lt.s32.totalorder %s180, 7
      %s182 = scalar_select %p181, %s180, 7
      %s183 = smul.addr %s182, 8
      %s184 = scalar_lea.vmem %s2, %s183
      %p185 = pneg %p87
      %p186 = pneg %p84
      %p187 = pneg %p113
      %p188 = pneg %p110
      %s189 = smul.u32 4, %s14
      %p190 = scmp.lt.s32.totalorder %s189, 7
      %s191 = scalar_select %p190, %s189, 7
      %s192 = smul.addr %s191, 4
      %s193 = scalar_lea.vmem %s3, %s192
      %s194 = smul.u32 4, %s14
      %p195 = scmp.lt.s32.totalorder %s194, 7
      %s196 = scalar_select %p195, %s194, 7
      %s197 = smul.addr %s196, 8
      %s198 = scalar_lea.vmem %s0, %s197
      %s199 = smul.u32 4, %s14
      %s200 = smul.u32 4, %s14
      %p201 = scmp.lt.s32.totalorder %s200, 7
      %s202 = scalar_select %p201, %s200, 7
      %s203 = smul.addr %s202, 8
      %s204 = scalar_lea.vmem %s1, %s203
      %s205 = smul.u32 4, %s14
      %s206 = smul.u32 4, %s14
      %p207 = scmp.lt.s32.totalorder %s206, 7
      %s208 = scalar_select %p207, %s206, 7
      %s209 = smul.addr %s208, 8
      %s210 = scalar_lea.vmem %s2, %s209
      %s211 = smul.u32 4, %s14
      %s212 = smul.u32 4, %s14
      %p213 = scmp.lt.s32.totalorder %s212, 7
      %s214 = scalar_select %p213, %s212, 7
      %s215 = smul.addr %s214, 4
      %s216 = scalar_lea.vmem %s3, %s215
      %s217 = smul.u32 4, %s14
      %v218 = vld [vmem:[%s198] sm:$0xff]
      %v219 = vld [vmem:[%s198 + $0x8] sm:$0xff]
      %v220 = vld [vmem:[%s198 + $0x10] sm:$0xff]
      %v221 = vld [vmem:[%s198 + $0x18] sm:$0xff]
      %v222 = vld [vmem:[%s204] sm:$0xff]
      %v223 = vld [vmem:[%s204 + $0x8] sm:$0xff]
      %v224 = vld [vmem:[%s204 + $0x10] sm:$0xff]
      %v225 = vld [vmem:[%s204 + $0x18] sm:$0xff]
      %v226 = vld [vmem:[%s210] sm:$0xff]
      %v227 = vld [vmem:[%s210 + $0x8] sm:$0xff]
      %v228 = vld [vmem:[%s210 + $0x10] sm:$0xff]
      %v229 = vld [vmem:[%s210 + $0x18] sm:$0xff]
      %v230 = vmul.f32 %v222, %v226
      %v231 = vmul.f32 %v223, %v227
      %v232 = vmul.f32 %v224, %v228
      %v233 = vmul.f32 %v225, %v229
      %v238 = vrot.slane %v218, 7
      %v239 = vrot.slane %v219, 7
      %v240 = vrot.slane %v220, 7
      %v241 = vrot.slane %v221, 7
      %vm246 = vcmask 1040384
      %v247 = vsel %vm246, %v238, %v238
      %v248 = vsel %vm246, %v239, %v239
      %v249 = vsel %vm246, %v240, %v240
      %v250 = vsel %vm246, %v241, %v241
      %252 = vset.pattern.permute.xlu0 0
      %253 = vperm.xlu0 %252, %v230
      %v254 = vpop.permute.xlu0 %253
      %257 = vset.pattern.permute.xlu0 0
      %258 = vperm.xlu0 %257, %v231
      %v259 = vpop.permute.xlu0 %258
      %262 = vset.pattern.permute.xlu0 0
      %263 = vperm.xlu0 %262, %v232
      %v264 = vpop.permute.xlu0 %263
      %267 = vset.pattern.permute.xlu0 0
      %268 = vperm.xlu0 %267, %v233
      %v269 = vpop.permute.xlu0 %268
      %v271 = vmul.f32 %v254, %v247
      %v272 = vmul.f32 %v259, %v248
      %v273 = vmul.f32 %v264, %v249
      %v274 = vmul.f32 %v269, %v250
      %v275 = vadd.f32 %v218, %v271
      %v276 = vadd.f32 %v219, %v272
      %v277 = vadd.f32 %v220, %v273
      %v278 = vadd.f32 %v221, %v274
      %v283 = vrot.slane %v275, 6
      %v284 = vrot.slane %v276, 6
      %v285 = vrot.slane %v277, 6
      %v286 = vrot.slane %v278, 6
      %vm291 = vcmask 1041408
      %v292 = vsel %vm291, %v283, %v283
      %v293 = vsel %vm291, %v284, %v284
      %v294 = vsel %vm291, %v285, %v285
      %v295 = vsel %vm291, %v286, %v286
      %296 = vset.pattern.permute.xlu0 1
      %297 = vperm.xlu0 %296, %v230
      %v298 = vpop.permute.xlu0 %297
      %300 = vset.pattern.permute.xlu0 1
      %301 = vperm.xlu0 %300, %v231
      %v302 = vpop.permute.xlu0 %301
      %304 = vset.pattern.permute.xlu0 1
      %305 = vperm.xlu0 %304, %v232
      %v306 = vpop.permute.xlu0 %305
      %308 = vset.pattern.permute.xlu0 1
      %309 = vperm.xlu0 %308, %v233
      %v310 = vpop.permute.xlu0 %309
      %v312 = vmul.f32 %v298, %v292
      %v313 = vmul.f32 %v302, %v293
      %v314 = vmul.f32 %v306, %v294
      %v315 = vmul.f32 %v310, %v295
      %v316 = vadd.f32 %v275, %v312
      %v317 = vadd.f32 %v276, %v313
      %v318 = vadd.f32 %v277, %v314
      %v319 = vadd.f32 %v278, %v315
      %v324 = vrot.slane %v316, 4
      %v325 = vrot.slane %v317, 4
      %v326 = vrot.slane %v318, 4
      %v327 = vrot.slane %v319, 4
      %vm332 = vcmask 1043456
      %v333 = vsel %vm332, %v324, %v324
      %v334 = vsel %vm332, %v325, %v325
      %v335 = vsel %vm332, %v326, %v326
      %v336 = vsel %vm332, %v327, %v327
      %337 = vset.pattern.permute.xlu0 2
      %338 = vperm.xlu0 %337, %v230
      %v339 = vpop.permute.xlu0 %338
      %341 = vset.pattern.permute.xlu0 2
      %342 = vperm.xlu0 %341, %v231
      %v343 = vpop.permute.xlu0 %342
      %345 = vset.pattern.permute.xlu0 2
      %346 = vperm.xlu0 %345, %v232
      %v347 = vpop.permute.xlu0 %346
      %349 = vset.pattern.permute.xlu0 2
      %350 = vperm.xlu0 %349, %v233
      %v351 = vpop.permute.xlu0 %350
      %v353 = vmul.f32 %v339, %v333
      %v354 = vmul.f32 %v343, %v334
      %v355 = vmul.f32 %v347, %v335
      %v356 = vmul.f32 %v351, %v336
      %v357 = vadd.f32 %v316, %v353
      %v358 = vadd.f32 %v317, %v354
      %v359 = vadd.f32 %v318, %v355
      %v360 = vadd.f32 %v319, %v356
      %v361 = vpack.c.bf16 %v357, %v357
      %v362 = vpack.c.bf16 %v358, %v358
      %v363 = vpack.c.bf16 %v359, %v359
      %v364 = vpack.c.bf16 %v360, %v360
      %vm365 = vcmask 60416
      %366 = vst.msk [vmem:[%s216] sm:$0xf] %vm365, %v361
      %367 = vst.msk [vmem:[%s216 + $0x4] sm:$0xf] %vm365, %v362
      %368 = vst.msk [vmem:[%s216 + $0x8] sm:$0xf] %vm365, %v363
      %369 = vst.msk [vmem:[%s216 + $0xc] sm:$0xf] %vm365, %v364
      %s370 = smul.u32 4, %s14
      %p371 = scmp.lt.s32.totalorder %s370, 7
      %s372 = scalar_select %p371, %s370, 7
      %s373 = smul.addr %s372, 4
      %s374 = scalar_lea.vmem %s3, %s373
      // Predicated region
      $region33: #{_dispatcher_forward.4} parent=31 // pred_check
        %p375 = pneg %p110
      $region34: #{_dispatcher_forward.4} parent=31 // pred_check_branch
        %377 = sbr.rel (%p375) target = $region36
      $region35: #{_dispatcher_forward.4} parent=31 // pred_region
        %s378 = smul.u32 4, %s14
      $region36: #{_dispatcher_forward.4} parent=31 // pred_fallthru
        _
    $region32: #{_dispatcher_forward.4} parent=5 // pred_fallthru
      _
    %p379 = scmp.le.s32.totalorder 2, %s9
    // Predicated region
    $region37: #{_dispatcher_forward.4} parent=5 // pred_check
      %p380 = pneg %p379
    $region38: #{_dispatcher_forward.4} parent=5 // pred_check_branch
      %382 = sbr.rel (%p380) target = $region40
    $region39: #{_dispatcher_forward.4} parent=5 // pred_region
      %s383 = ssub.s32 %s9, 2
      // Predicated region
      $region41: #{_dispatcher_forward.4} parent=39 // pred_check
        %p384 = pneg %p116
      $region42: #{_dispatcher_forward.4} parent=39 // pred_check_branch
        %386 = sbr.rel (%p384) target = $region44
      $region43: #{_dispatcher_forward.4} parent=39 // pred_region
        %s387 = smul.u32 4, %s15
        %p388 = scmp.lt.s32.totalorder %s387, 7
        %s389 = scalar_select %p388, %s387, 7
        %s390 = smul.addr %s389, 4
        %s391 = scalar_lea.vmem %s3, %s390
      $region44: #{_dispatcher_forward.4} parent=39 // pred_fallthru
        _
    $region40: #{_dispatcher_forward.4} parent=5 // pred_fallthru
      _
  $region6: #{_dispatcher_forward.4} parent=0 // loop_footer
    %s13 = sadd.s32 1, %s9
  $region7: #{_dispatcher_forward.4} parent=0 // loop_footer_branch
    %8 = sbr.rel target = $region3
  $region8: #{_dispatcher_forward.4} parent=0 // loop_exit
    _

// kernel: _dispatcher_forward.5
$region0: #{_dispatcher_forward.5}
  #allocation0 [shape = 'u32[]', space=smem, size = 0x4, offset = 0x4, fixed_abs, tag = 'smem constant byte address 0x4 - core index']
  #allocation1 [shape = 'u32[144,128]{1,0:T(1,128)}', space=vmem, size = 0x12000, scoped, tag = 'internal scratch']
  %s0 = inlined_call_operand.vmem [shape: bf16[16,32], index: 0, kind: input, shape index: {}]
  %s1 = inlined_call_operand.vmem [shape: bf16[32,32], index: 1, kind: input, shape index: {}]
  %s2 = inlined_call_operand.vmem [shape: f32[16,32], index: 2, kind: output, shape index: {}]
  %s3 = sld [smem:[#allocation0]]
  $region41: #{_dispatcher_forward.5} parent=0
    _
  %s5 = ssub.s32 1, %s3
  %s6 = scalar_select 0, %s5, %s3
  loop: start=0, step=1, limit=4
  $region2: #{_dispatcher_forward.5} parent=0 // loop_pre_header
    _
  $region3: #{_dispatcher_forward.5} parent=0 // loop_header
    %s8 = sphi 0, %s12
    %p9 = scmp.ge.s32.totalorder %s8, 4
    %s18 = sphi 0, %s20
    %s21 = sphi 0, %s18
    %s22 = sphi 0, %s21
    %s38 = sphi 0, %s22
    %s42 = sphi 0, %s42
    %s44 = sphi 0, %s42
    %s45 = sphi 0, %s44
    %s59 = sphi 0, %s45
    %s65 = sphi 0, %s67
    %s68 = sphi 0, %s65
    %s69 = sphi 0, %s68
    %s85 = sphi 0, %s69
  $region4: #{_dispatcher_forward.5} parent=0 // loop_header_branch
    %11 = sbr.rel (%p9) target = $region8
  $region5: #{_dispatcher_forward.5} parent=0 // loop_body
    %s13 = ssub.s32 %s8, 1
    %s14 = ssub.s32 %s8, 2
    %s15 = sadd.s32 %s8, 1
    %s16 = ssub.s32 %s8, %s15
    %p17 = scmp.eq.s32.totalorder %s16, 0
    %s19 = sadd.s32 %s18, 1
    %s20 = scalar_select %p17, %s18, %s19
    %p23 = pneg %p17
    %p24 = scmp.eq.s32.totalorder %s8, 1
    %p25 = por %p23, %p24
    %p26 = scmp.ne.s32.totalorder %s18, %s21
    %p27 = scmp.eq.s32.totalorder %s8, 0
    %p28 = por %p26, %p27
    %p29 = scmp.ne.s32.totalorder %s18, %s21
    %p30 = scmp.eq.s32.totalorder %s13, 1
    %p31 = por %p29, %p30
    %p32 = scmp.ne.s32.totalorder %s21, %s22
    %p33 = scmp.eq.s32.totalorder %s13, 0
    %p34 = por %p32, %p33
    %p35 = scmp.ne.s32.totalorder %s21, %s22
    %p36 = scmp.eq.s32.totalorder %s14, 1
    %p37 = por %p35, %p36
    %p39 = scmp.ne.s32.totalorder %s22, %s38
    %p40 = scmp.eq.s32.totalorder %s14, 0
    %p41 = por %p39, %p40
    %s43 = sadd.s32 %s42, 1
    %p46 = scmp.eq.s32.totalorder %s8, 1
    %p47 = scmp.ne.s32.totalorder %s42, %s44
    %p48 = scmp.eq.s32.totalorder %s8, 0
    %p49 = por %p47, %p48
    %p50 = scmp.ne.s32.totalorder %s42, %s44
    %p51 = scmp.eq.s32.totalorder %s13, 1
    %p52 = por %p50, %p51
    %p53 = scmp.ne.s32.totalorder %s44, %s45
    %p54 = scmp.eq.s32.totalorder %s13, 0
    %p55 = por %p53, %p54
    %p56 = scmp.ne.s32.totalorder %s44, %s45
    %p57 = scmp.eq.s32.totalorder %s14, 1
    %p58 = por %p56, %p57
    %p60 = scmp.ne.s32.totalorder %s45, %s59
    %p61 = scmp.eq.s32.totalorder %s14, 0
    %p62 = por %p60, %p61
    %s63 = ssub.s32 %s8, %s15
    %p64 = scmp.eq.s32.totalorder %s63, 0
    %s66 = sadd.s32 %s65, 1
    %s67 = scalar_select %p64, %s65, %s66
    %p70 = pneg %p64
    %p71 = scmp.eq.s32.totalorder %s8, 1
    %p72 = por %p70, %p71
    %p73 = scmp.ne.s32.totalorder %s65, %s68
    %p74 = scmp.eq.s32.totalorder %s8, 0
    %p75 = por %p73, %p74
    %p76 = scmp.ne.s32.totalorder %s65, %s68
    %p77 = scmp.eq.s32.totalorder %s13, 1
    %p78 = por %p76, %p77
    %p79 = scmp.ne.s32.totalorder %s68, %s69
    %p80 = scmp.eq.s32.totalorder %s13, 0
    %p81 = por %p79, %p80
    %p82 = scmp.ne.s32.totalorder %s68, %s69
    %p83 = scmp.eq.s32.totalorder %s14, 1
    %p84 = por %p82, %p83
    %p86 = scmp.ne.s32.totalorder %s69, %s85
    %p87 = scmp.eq.s32.totalorder %s14, 0
    %p88 = por %p86, %p87
    %p89 = scmp.le.s32.totalorder 1, %s8
    %p90 = scmp.lt.s32.totalorder %s8, 3
    %p91 = pnand %p89, %p90
    %p92 = pneg %p91
    // Predicated region
    $region9: #{_dispatcher_forward.5} parent=5 // pred_check
      _
    $region10: #{_dispatcher_forward.5} parent=5 // pred_check_branch
      %94 = sbr.rel (%p91) target = $region12
    $region11: #{_dispatcher_forward.5} parent=5 // pred_region
      %s95 = ssub.s32 %s8, 1
      // Predicated region
      $region13: #{_dispatcher_forward.5} parent=11 // pred_check
        %p96 = pneg %p55
      $region14: #{_dispatcher_forward.5} parent=11 // pred_check_branch
        %98 = sbr.rel (%p96) target = $region16
      $region15: #{_dispatcher_forward.5} parent=11 // pred_region
        _
      $region16: #{_dispatcher_forward.5} parent=11 // pred_fallthru
        _
    $region12: #{_dispatcher_forward.5} parent=5 // pred_fallthru
      _
    %p99 = scmp.lt.s32.totalorder %s8, 2
    // Predicated region
    $region17: #{_dispatcher_forward.5} parent=5 // pred_check
      %p100 = pneg %p99
    $region18: #{_dispatcher_forward.5} parent=5 // pred_check_branch
      %102 = sbr.rel (%p100) target = $region20
    $region19: #{_dispatcher_forward.5} parent=5 // pred_region
      // Predicated region
      $region21: #{_dispatcher_forward.5} parent=19 // pred_check
        %p103 = pneg %p28
      $region22: #{_dispatcher_forward.5} parent=19 // pred_check_branch
        %105 = sbr.rel (%p103) target = $region24
      $region23: #{_dispatcher_forward.5} parent=19 // pred_region
        %p106 = scmp.lt.s32.totalorder %s8, 1
        %s107 = scalar_select %p106, %s8, 1
        %s108 = smul.addr %s107, 4
        %s109 = scalar_lea.vmem %s0, %s108
      $region24: #{_dispatcher_forward.5} parent=19 // pred_fallthru
        _
    $region20: #{_dispatcher_forward.5} parent=5 // pred_fallthru
      _
    %p110 = scmp.le.s32.totalorder 1, %s8
    %p111 = scmp.lt.s32.totalorder %s8, 3
    %p112 = pnand %p110, %p111
    %p113 = pneg %p112
    // Predicated region
    $region25: #{_dispatcher_forward.5} parent=5 // pred_check
      _
    $region26: #{_dispatcher_forward.5} parent=5 // pred_check_branch
      %115 = sbr.rel (%p112) target = $region28
    $region27: #{_dispatcher_forward.5} parent=5 // pred_region
      %s116 = ssub.s32 %s8, 1
      %p117 = scmp.lt.s32.totalorder %s13, 1
      %s118 = scalar_select %p117, %s13, 1
      %s119 = smul.addr %s118, 4
      %s120 = scalar_lea.vmem %s0, %s119
      %p121 = pneg %p34
      %p122 = pneg %p31
      %p123 = pneg %p55
      %p124 = pneg %p52
      %p125 = pneg %p81
      %p126 = pneg %p78
      %p127 = scmp.lt.s32.totalorder %s13, 1
      %s128 = scalar_select %p127, %s13, 1
      %s129 = smul.addr %s128, 8
      %s130 = scalar_lea.vmem %s2, %s129
      %p131 = scmp.lt.s32.totalorder %s13, 1
      %s132 = scalar_select %p131, %s13, 1
      %s133 = smul.addr %s132, 4
      %s134 = scalar_lea.vmem %s0, %s133
      %p135 = scmp.lt.s32.totalorder %s13, 1
      %s136 = scalar_select %p135, %s13, 1
      %s137 = smul.addr %s136, 8
      %s138 = scalar_lea.vmem %s2, %s137
      %v140 = vld [vmem:[%s134] sm:$0xf]
      %v141 = vld [vmem:[%s1] sm:$0xf]
      %v142 = vld [vmem:[%s1 + $0x4] sm:$0xf]
      %v143 = vld [vmem:[%s1 + $0x8] sm:$0xf]
      %v144 = vld [vmem:[%s1 + $0xc] sm:$0xf]
      %v149 = vunpack.c.l.b16 %v141
      %v150 = vunpack.c.l.b16 %v142
      %v151 = vunpack.c.l.b16 %v143
      %v152 = vunpack.c.l.b16 %v144
      %v153 = vpack.c.b16 %v150, %v149
      %v154 = vpack.c.b16 %v152, %v151
      %vm157 = vcmask 261120
      %v159 = vsel %vm157, %v140, 0
      %161 = vmatprep.subr.bf16.mxu0 0
      %162 = vmatpush1.bf16.msra.mxu0 %v153
      %163 = vmatprep.subr.bf16.mxu0 0
      %164 = vmatpush1.bf16.msra.mxu0 %v154
      %165 = vmatprep.subr.bf16.mxu0 0
      %166 = vmatpush1.bf16.msra.mxu0 0
      %167 = vmatprep.subr.bf16.mxu0 0
      %168 = vmatpush1.bf16.msra.mxu0 0
      %169 = vmatprep.subr.bf16.mxu0 0
      %170 = vmatpush1.bf16.msra.mxu0 0
      %171 = vmatprep.subr.bf16.mxu0 0
      %172 = vmatpush1.bf16.msra.mxu0 0
      %173 = vmatprep.subr.bf16.mxu0 0
      %174 = vmatpush1.bf16.msra.mxu0 0
      %175 = vmatprep.subr.bf16.mxu0 0
      %176 = vmatpush1.bf16.msra.mxu0 0
      %177 = vmatprep.subr.bf16.mxu0 0
      %178 = vmatpush1.bf16.msra.mxu0 0
      %179 = vmatprep.subr.bf16.mxu0 0
      %180 = vmatpush1.bf16.msra.mxu0 0
      %181 = vmatprep.subr.bf16.mxu0 0
      %182 = vmatpush1.bf16.msra.mxu0 0
      %183 = vmatprep.subr.bf16.mxu0 0
      %184 = vmatpush1.bf16.msra.mxu0 0
      %185 = vmatprep.subr.bf16.mxu0 0
      %186 = vmatpush1.bf16.msra.mxu0 0
      %187 = vmatprep.subr.bf16.mxu0 0
      %188 = vmatpush1.bf16.msra.mxu0 0
      %189 = vmatprep.subr.bf16.mxu0 0
      %190 = vmatpush1.bf16.msra.mxu0 0
      %191 = vmatprep.subr.bf16.mxu0 0
      %192 = vmatpush1.bf16.msra.mxu0 0
      %193 = vmatprep.mubr.bf16.mxu0 0
      %194 = vmatmul.mubr.bf16.gmra.mrb[0].mxu0 %v159
      %v195 = vpop.f32.mrb[0].mxu0
      %v196 = vadd.f32 0.0, %v195
      %v197 = vpop.f32.mrb[0].mxu0
      %v198 = vpop.f32.mrb[0].mxu0
      %v199 = vpop.f32.mrb[0].mxu0
      %200 = vdwg.mxu0
      %201 = vst.msk [vmem:[%s138] sm:$0xff] %vm157, %v196
      %p202 = scmp.lt.s32.totalorder %s13, 1
      %s203 = scalar_select %p202, %s13, 1
      %s204 = smul.addr %s203, 8
      %s205 = scalar_lea.vmem %s2, %s204
      // Predicated region
      $region29: #{_dispatcher_forward.5} parent=27 // pred_check
        %p206 = pneg %p78
      $region30: #{_dispatcher_forward.5} parent=27 // pred_check_branch
        %208 = sbr.rel (%p206) target = $region32
      $region31: #{_dispatcher_forward.5} parent=27 // pred_region
        _
      $region32: #{_dispatcher_forward.5} parent=27 // pred_fallthru
        _
    $region28: #{_dispatcher_forward.5} parent=5 // pred_fallthru
      _
    %p209 = scmp.le.s32.totalorder 2, %s8
    // Predicated region
    $region33: #{_dispatcher_forward.5} parent=5 // pred_check
      %p210 = pneg %p209
    $region34: #{_dispatcher_forward.5} parent=5 // pred_check_branch
      %212 = sbr.rel (%p210) target = $region36
    $region35: #{_dispatcher_forward.5} parent=5 // pred_region
      %s213 = ssub.s32 %s8, 2
      // Predicated region
      $region37: #{_dispatcher_forward.5} parent=35 // pred_check
        %p214 = pneg %p84
      $region38: #{_dispatcher_forward.5} parent=35 // pred_check_branch
        %216 = sbr.rel (%p214) target = $region40
      $region39: #{_dispatcher_forward.5} parent=35 // pred_region
        %p217 = scmp.lt.s32.totalorder %s14, 1
        %s218 = scalar_select %p217, %s14, 1
        %s219 = smul.addr %s218, 8
        %s220 = scalar_lea.vmem %s2, %s219
      $region40: #{_dispatcher_forward.5} parent=35 // pred_fallthru
        _
    $region36: #{_dispatcher_forward.5} parent=5 // pred_fallthru
      _
  $region6: #{_dispatcher_forward.5} parent=0 // loop_footer
    %s12 = sadd.s32 1, %s8
  $region7: #{_dispatcher_forward.5} parent=0 // loop_footer_branch
    %7 = sbr.rel target = $region3
  $region8: #{_dispatcher_forward.5} parent=0 // loop_exit
    _

</llo_original>
